<compile_context>
chip_gen: v7x
topology: tpu7x:2x2x1
jax: 0.10.0
libtpu: 0.0.40
codegen_flags: <defaults>
</compile_context>

<pallas_src>
import functools

import jax
import jax.numpy as jnp
from jax.experimental import pallas as pl
from jax.experimental.pallas import tpu as pltpu

KH = KW = 7
PAD = 3

_TARGET_BLOCK_BYTES = 12 * 1024 * 1024  # amortizes ~0.35us/step even at v7x HBM BW


def _cdiv(a, b):
    return -(-a // b)


def _largest_divisor_leq(n, cap):
    cap = max(1, min(n, cap))
    for d in range(cap, 0, -1):
        if n % d == 0:
            return d
    return 1


def _query_vmem_capacity():
    try:
        return int(pltpu.get_tpu_info().vmem_capacity_bytes)
    except Exception:
        return 64 * 1024 * 1024  # conservative default (v7x per-TensorCore VMEM)


def _read_conv_params(wb_ref):
    # wb_ref: SMEM f32[2*7*7 + 1] = flattened conv weight [2,7,7] then bias.
    w = [[[wb_ref[c * KH * KW + dy * KW + dx] for dx in range(KW)]
          for dy in range(KH)] for c in range(2)]
    return w, wb_ref[2 * KH * KW]


def _make_col_masks(W, HW):
    # Column-validity masks, one per dx. Row-invalid taps need no mask: they
    # land in the zero halo. Built in-kernel (no HBM/VMEM mask traffic).
    col = jax.lax.broadcasted_iota(jnp.int32, (1, HW), 1) % W
    masks = []
    for dx in range(KW):
        lo = PAD - dx          # x + dx - PAD >= 0
        hi = W + PAD - dx      # x + dx - PAD <  W
        masks.append(((col >= lo) & (col < hi)).astype(jnp.float32))
    return masks


def _conv_sigmoid(avg, mx, w, bias, col_masks, W, HW):
    # 7x7 conv (PyTorch cross-correlation, zero padding 3) on the flattened
    # pooled maps, fully in registers. Tap (dy, dx) of output pixel p = y*W+x
    # reads flat index p + (dy-3)*W + (dx-3) out of a zero-extended row; taps
    # are grouped by dx so only 7 mask multiplies are needed.
    f32 = jnp.float32
    halo = PAD * W + PAD
    zpad = jnp.zeros((1, halo), f32)
    avg_p = jnp.concatenate([zpad, avg, zpad], axis=1)
    max_p = jnp.concatenate([zpad, mx, zpad], axis=1)
    acc = jnp.full((1, HW), bias, f32)
    for dx in range(KW):
        col_acc = jnp.zeros((1, HW), f32)
        for dy in range(KH):
            off = (dy - PAD) * W + (dx - PAD) + halo   # static, in [0, 2*halo]
            col_acc = (col_acc
                       + w[0][dy][dx] * avg_p[:, off:off + HW]
                       + w[1][dy][dx] * max_p[:, off:off + HW])
        acc = acc + col_acc * col_masks[dx]
    return jax.nn.sigmoid(acc)


# ----------------------------------------------------------------------------
# Fused path: one or more whole batch elements per grid step.
# ----------------------------------------------------------------------------
def _spatial_attn_kernel(wb_ref, x_ref, o_ref, *, C, H, W, NB, CK):
    # wb_ref: SMEM f32[99]; x_ref / o_ref: VMEM [NB, C, H*W].
    HW = H * W
    f32 = jnp.float32
    n_ck = C // CK

    # Hoisted once per grid step: 99 SMEM scalar reads + 7 column masks.
    w, bias = _read_conv_params(wb_ref)
    col_masks = _make_col_masks(W, HW)

    def one_batch(b, carry):
        # ---- channel mean / max, streamed over C chunks (bounded live ranges).
        def red_body(ci, sm):
            s_acc, m_acc = sm
            c0 = pl.multiple_of(ci * CK, CK)
            xc = x_ref[b, pl.ds(c0, CK), :].astype(f32)
            return (s_acc + jnp.sum(xc, axis=0, keepdims=True),
                    jnp.maximum(m_acc, jnp.max(xc, axis=0, keepdims=True)))

        s_acc, m_acc = jax.lax.fori_loop(
            0, n_ck, red_body,
            (jnp.zeros((1, HW), f32), jnp.full((1, HW), -jnp.inf, f32)))

        gate = _conv_sigmoid(s_acc * (1.0 / C), m_acc, w, bias, col_masks, W, HW)
        gate = gate.astype(o_ref.dtype)   # single cast; multiply in input dtype

        # ---- gate the input; lane-dense stores, streamed over C chunks.
        def mul_body(ci, inner_carry):
            c0 = pl.multiple_of(ci * CK, CK)
            o_ref[b, pl.ds(c0, CK), :] = x_ref[b, pl.ds(c0, CK), :] * gate
            return inner_carry

        jax.lax.fori_loop(0, n_ck, mul_body, 0)
        return carry

    jax.lax.fori_loop(0, NB, one_batch, 0)


def _fused_call(x_flat, wb, N, C, H, W, bytes_per_b, block_budget, phys_cap):
    HW = H * W
    dtype = x_flat.dtype

    # Batch-block size: large DMAs (target ~12 MiB/step), within the VMEM
    # budget (2x in + 2x out double buffers), and keep >= 2 grid steps so both
    # v7x TensorCores get work.
    nb = max(1, min(N,
                    block_budget // bytes_per_b,
                    _cdiv(_TARGET_BLOCK_BYTES, bytes_per_b)))
    if N >= 2:
        nb = max(1, min(nb, N // 2))
    grid_n = _cdiv(N, nb)
    if grid_n > 1 and grid_n % 2:          # prefer an even step count (TC balance)
        nb_alt = _cdiv(N, grid_n + 1)
        if nb_alt >= 1 and _cdiv(N, nb_alt) % 2 == 0:
            nb = nb_alt
            grid_n = _cdiv(N, nb)

    n_pad = grid_n * nb
    if n_pad != N:                          # ragged batch: zero-pad, don't shrink nb
        x_flat = jnp.concatenate(
            [x_flat, jnp.zeros((n_pad - N, C, HW), dtype)], axis=0)

    # C-chunk size for the in-kernel streaming loops (<= ~128 KiB f32 per chunk).
    ck = _largest_divisor_leq(C, max(1, (128 * 1024) // max(1, HW * 4)))

    # Explicit scoped-VMEM limit sized to the chosen blocks (+ headroom), capped
    # at physical VMEM (64 MiB on v7x, 128 MiB on v5e/v6e).
    vmem_limit = int(min(phys_cap,
                         max(4 * nb * bytes_per_b + (8 << 20), 32 << 20)))

    kernel = functools.partial(_spatial_attn_kernel, C=C, H=H, W=W, NB=nb, CK=ck)
    out_flat = pl.pallas_call(
        kernel,
        out_shape=jax.ShapeDtypeStruct((n_pad, C, HW), dtype),
        grid=(grid_n,),
        in_specs=[
            pl.BlockSpec(memory_space=pltpu.MemorySpace.SMEM),    # conv weights + bias
            pl.BlockSpec((nb, C, HW), lambda n: (n, 0, 0)),        # x batch block
        ],
        out_specs=pl.BlockSpec((nb, C, HW), lambda n: (n, 0, 0)),
        compiler_params=pltpu.CompilerParams(
            dimension_semantics=("parallel",),
            vmem_limit_bytes=vmem_limit),
    )(wb, x_flat)
    if n_pad != N:
        out_flat = out_flat[:N]
    return out_flat


# ----------------------------------------------------------------------------
# Fallback path: batch element too large for VMEM -> two C-blocked passes.
# ----------------------------------------------------------------------------
def _gate_kernel(wb_ref, x_ref, g_ref, s_ref, m_ref, *, C, H, W):
    # x_ref: (1, ck, HW) block; g_ref: (1, 1, HW); s_ref/m_ref: (1, HW) f32 scratch.
    HW = H * W
    f32 = jnp.float32
    c = pl.program_id(1)

    @pl.when(c == 0)
    def _():
        s_ref[...] = jnp.zeros_like(s_ref)
        m_ref[...] = jnp.full_like(m_ref, -jnp.inf)

    xc = x_ref[0].astype(f32)                       # (ck, HW)
    s_ref[...] = s_ref[...] + jnp.sum(xc, axis=0, keepdims=True)
    m_ref[...] = jnp.maximum(m_ref[...], jnp.max(xc, axis=0, keepdims=True))

    @pl.when(c == pl.num_programs(1) - 1)
    def _():
        w, bias = _read_conv_params(wb_ref)
        col_masks = _make_col_masks(W, HW)
        gate = _conv_sigmoid(s_ref[...] * (1.0 / C), m_ref[...],
                             w, bias, col_masks, W, HW)
        g_ref[...] = gate.reshape(1, 1, HW).astype(g_ref.dtype)


def _apply_gate_kernel(x_ref, g_ref, o_ref):
    o_ref[...] = x_ref[...] * g_ref[...]


def _two_pass_call(x_flat, wb, N, C, H, W, block_budget, phys_cap):
    HW = H * W
    dtype = x_flat.dtype
    itemsize = dtype.itemsize

    # TODO(synk): if even a single (1, HW) spatial row exceeds the VMEM budget,
    # an additional H-blocked split (with 3-row conv halos) would be needed.
    max_ck = max(1, min(block_budget, _TARGET_BLOCK_BYTES) // max(1, HW * itemsize))
    ck = _largest_divisor_leq(C, max_ck)
    nc = C // ck

    vmem_limit = int(min(phys_cap,
                         max(4 * ck * HW * itemsize + 8 * HW * 4 + (8 << 20),
                             32 << 20)))

    # Pass 1: C-blocked mean/max reduction -> 7x7 conv -> sigmoid gate (N,1,HW).
    gate = pl.pallas_call(
        functools.partial(_gate_kernel, C=C, H=H, W=W),
        out_shape=jax.ShapeDtypeStruct((N, 1, HW), dtype),
        grid=(N, nc),
        in_specs=[
            pl.BlockSpec(memory_space=pltpu.MemorySpace.SMEM),
            pl.BlockSpec((1, ck, HW), lambda n, c: (n, c, 0)),
        ],
        out_specs=pl.BlockSpec((1, 1, HW), lambda n, c: (n, 0, 0)),
        scratch_shapes=[pltpu.VMEM((1, HW), jnp.float32),
                        pltpu.VMEM((1, HW), jnp.float32)],
        compiler_params=pltpu.CompilerParams(
            dimension_semantics=("parallel", "arbitrary"),
            vmem_limit_bytes=vmem_limit),
    )(wb, x_flat)

    # Pass 2: C-blocked gating multiply (fully parallel).
    out_flat = pl.pallas_call(
        _apply_gate_kernel,
        out_shape=jax.ShapeDtypeStruct((N, C, HW), dtype),
        grid=(N, nc),
        in_specs=[
            pl.BlockSpec((1, ck, HW), lambda n, c: (n, c, 0)),
            pl.BlockSpec((1, 1, HW), lambda n, c: (n, 0, 0)),
        ],
        out_specs=pl.BlockSpec((1, ck, HW), lambda n, c: (n, c, 0)),
        compiler_params=pltpu.CompilerParams(
            dimension_semantics=("parallel", "parallel"),
            vmem_limit_bytes=vmem_limit),
    )(x_flat, gate)
    return out_flat


# ----------------------------------------------------------------------------
# Public wrapper.
# ----------------------------------------------------------------------------
def spatial_attention(x, conv_w, conv_b, *, vmem_budget_bytes=None):
    """x: (N,C,H,W); conv_w: (1,2,7,7); conv_b: (1,). Returns (N,C,H,W)."""
    N, C, H, W = x.shape
    HW = H * W
    itemsize = x.dtype.itemsize

    # Lane-dense layout for the big tensor (row-major reshape == free bitcast).
    x_flat = x.reshape(N, C, HW)

    # Flattened weights + bias for SMEM.
    wb = jnp.concatenate(
        [conv_w.reshape(-1), conv_b.reshape(-1)]).astype(jnp.float32)   # (99,)

    phys_cap = _query_vmem_capacity()
    budget = (int(vmem_budget_bytes) if vmem_budget_bytes is not None
              else int(phys_cap * 0.70))
    block_budget = max(1, budget // 4)      # 2x(in) + 2x(out) double buffers
    bytes_per_b = C * HW * itemsize

    if bytes_per_b <= block_budget:
        out_flat = _fused_call(x_flat, wb, N, C, H, W,
                               bytes_per_b, block_budget, phys_cap)
    else:
        out_flat = _two_pass_call(x_flat, wb, N, C, H, W, block_budget, phys_cap)
    return out_flat.reshape(N, C, H, W)


def _reference(x, conv_w, conv_b):
    # Pure-JAX reference (mirrors the PyTorch forward exactly).
    avg_pool = jnp.mean(x, axis=1, keepdims=True)
    max_pool = jnp.max(x, axis=1, keepdims=True)
    scale = jnp.concatenate([avg_pool, max_pool], axis=1)             # (N,2,H,W)
    conv = jax.lax.conv_general_dilated(
        scale, conv_w, window_strides=(1, 1),
        padding=[(PAD, PAD), (PAD, PAD)],
        dimension_numbers=("NCHW", "OIHW", "NCHW"))
    conv = conv + conv_b.reshape(1, 1, 1, 1)
    return jax.nn.sigmoid(conv) * x


if __name__ == "__main__":
    key = jax.random.PRNGKey(0)
    kx, kw, kb = jax.random.split(key, 3)

    N, C, H, W = 2, 4, 16, 16
    x = jax.random.normal(kx, (N, C, H, W), dtype=jnp.float32)

    # Deterministic synthetic parameters (shapes from nn.Conv2d(2, 1, 7, padding=3)).
    fan_in = 2 * KH * KW
    bound = 1.0 / (fan_in ** 0.5)
    conv_w = jax.random.uniform(kw, (1, 2, KH, KW), jnp.float32, -bound, bound)
    conv_b = jax.random.uniform(kb, (1,), jnp.float32, -bound, bound)

    ref = jax.block_until_ready(_reference(x, conv_w, conv_b))

    # Main fused path.
    out = jax.block_until_ready(spatial_attention(x, conv_w, conv_b))
    assert out.shape == (N, C, H, W)
    assert jnp.allclose(out, ref, atol=1e-5, rtol=1e-5), (
        float(jnp.max(jnp.abs(out - ref))))

    # C-blocked two-pass fallback path (forced via a tiny tiling budget).
    out2 = jax.block_until_ready(
        spatial_attention(x, conv_w, conv_b, vmem_budget_bytes=8 * 1024))
    assert jnp.allclose(out2, ref, atol=1e-5, rtol=1e-5), (
        float(jnp.max(jnp.abs(out2 - ref))))

    print("KERNEL_OK")
</pallas_src>

<mosaic_0001>
module attributes {stable_mosaic.version = 11 : i64} {
  func.func @_spatial_attn_kernel(%arg0: i32, %arg1: memref<99xf32, #tpu.memory_space<smem>>, %arg2: memref<1x4x256xf32, #tpu.memory_space<vmem>>, %arg3: memref<1x4x256xf32, #tpu.memory_space<vmem>>) attributes {dimension_semantics = [#tpu.dimension_semantics<parallel>], iteration_bounds = array<i64: 2>, scalar_prefetch = 0 : i64, scratch_operands = 0 : i64, tpu.core_type = #tpu.core_type<tc>, window_params = [{transform_indices = @transform_0, window_bounds = array<i64: 99>}, {transform_indices = @transform_1, window_bounds = array<i64: 1, 4, 256>}, {transform_indices = @transform_2, window_bounds = array<i64: 1, 4, 256>}]} {
    %c0 = arith.constant 0 : index
    %0 = memref.load %arg1[%c0] : memref<99xf32, #tpu.memory_space<smem>>
    %c1 = arith.constant 1 : index
    %1 = memref.load %arg1[%c1] : memref<99xf32, #tpu.memory_space<smem>>
    %c2 = arith.constant 2 : index
    %2 = memref.load %arg1[%c2] : memref<99xf32, #tpu.memory_space<smem>>
    %c3 = arith.constant 3 : index
    %3 = memref.load %arg1[%c3] : memref<99xf32, #tpu.memory_space<smem>>
    %c4 = arith.constant 4 : index
    %4 = memref.load %arg1[%c4] : memref<99xf32, #tpu.memory_space<smem>>
    %c5 = arith.constant 5 : index
    %5 = memref.load %arg1[%c5] : memref<99xf32, #tpu.memory_space<smem>>
    %c6 = arith.constant 6 : index
    %6 = memref.load %arg1[%c6] : memref<99xf32, #tpu.memory_space<smem>>
    %c7 = arith.constant 7 : index
    %7 = memref.load %arg1[%c7] : memref<99xf32, #tpu.memory_space<smem>>
    %c8 = arith.constant 8 : index
    %8 = memref.load %arg1[%c8] : memref<99xf32, #tpu.memory_space<smem>>
    %c9 = arith.constant 9 : index
    %9 = memref.load %arg1[%c9] : memref<99xf32, #tpu.memory_space<smem>>
    %c10 = arith.constant 10 : index
    %10 = memref.load %arg1[%c10] : memref<99xf32, #tpu.memory_space<smem>>
    %c11 = arith.constant 11 : index
    %11 = memref.load %arg1[%c11] : memref<99xf32, #tpu.memory_space<smem>>
    %c12 = arith.constant 12 : index
    %12 = memref.load %arg1[%c12] : memref<99xf32, #tpu.memory_space<smem>>
    %c13 = arith.constant 13 : index
    %13 = memref.load %arg1[%c13] : memref<99xf32, #tpu.memory_space<smem>>
    %c14 = arith.constant 14 : index
    %14 = memref.load %arg1[%c14] : memref<99xf32, #tpu.memory_space<smem>>
    %c15 = arith.constant 15 : index
    %15 = memref.load %arg1[%c15] : memref<99xf32, #tpu.memory_space<smem>>
    %c16 = arith.constant 16 : index
    %16 = memref.load %arg1[%c16] : memref<99xf32, #tpu.memory_space<smem>>
    %c17 = arith.constant 17 : index
    %17 = memref.load %arg1[%c17] : memref<99xf32, #tpu.memory_space<smem>>
    %c18 = arith.constant 18 : index
    %18 = memref.load %arg1[%c18] : memref<99xf32, #tpu.memory_space<smem>>
    %c19 = arith.constant 19 : index
    %19 = memref.load %arg1[%c19] : memref<99xf32, #tpu.memory_space<smem>>
    %c20 = arith.constant 20 : index
    %20 = memref.load %arg1[%c20] : memref<99xf32, #tpu.memory_space<smem>>
    %c21 = arith.constant 21 : index
    %21 = memref.load %arg1[%c21] : memref<99xf32, #tpu.memory_space<smem>>
    %c22 = arith.constant 22 : index
    %22 = memref.load %arg1[%c22] : memref<99xf32, #tpu.memory_space<smem>>
    %c23 = arith.constant 23 : index
    %23 = memref.load %arg1[%c23] : memref<99xf32, #tpu.memory_space<smem>>
    %c24 = arith.constant 24 : index
    %24 = memref.load %arg1[%c24] : memref<99xf32, #tpu.memory_space<smem>>
    %c25 = arith.constant 25 : index
    %25 = memref.load %arg1[%c25] : memref<99xf32, #tpu.memory_space<smem>>
    %c26 = arith.constant 26 : index
    %26 = memref.load %arg1[%c26] : memref<99xf32, #tpu.memory_space<smem>>
    %c27 = arith.constant 27 : index
    %27 = memref.load %arg1[%c27] : memref<99xf32, #tpu.memory_space<smem>>
    %c28 = arith.constant 28 : index
    %28 = memref.load %arg1[%c28] : memref<99xf32, #tpu.memory_space<smem>>
    %c29 = arith.constant 29 : index
    %29 = memref.load %arg1[%c29] : memref<99xf32, #tpu.memory_space<smem>>
    %c30 = arith.constant 30 : index
    %30 = memref.load %arg1[%c30] : memref<99xf32, #tpu.memory_space<smem>>
    %c31 = arith.constant 31 : index
    %31 = memref.load %arg1[%c31] : memref<99xf32, #tpu.memory_space<smem>>
    %c32 = arith.constant 32 : index
    %32 = memref.load %arg1[%c32] : memref<99xf32, #tpu.memory_space<smem>>
    %c33 = arith.constant 33 : index
    %33 = memref.load %arg1[%c33] : memref<99xf32, #tpu.memory_space<smem>>
    %c34 = arith.constant 34 : index
    %34 = memref.load %arg1[%c34] : memref<99xf32, #tpu.memory_space<smem>>
    %c35 = arith.constant 35 : index
    %35 = memref.load %arg1[%c35] : memref<99xf32, #tpu.memory_space<smem>>
    %c36 = arith.constant 36 : index
    %36 = memref.load %arg1[%c36] : memref<99xf32, #tpu.memory_space<smem>>
    %c37 = arith.constant 37 : index
    %37 = memref.load %arg1[%c37] : memref<99xf32, #tpu.memory_space<smem>>
    %c38 = arith.constant 38 : index
    %38 = memref.load %arg1[%c38] : memref<99xf32, #tpu.memory_space<smem>>
    %c39 = arith.constant 39 : index
    %39 = memref.load %arg1[%c39] : memref<99xf32, #tpu.memory_space<smem>>
    %c40 = arith.constant 40 : index
    %40 = memref.load %arg1[%c40] : memref<99xf32, #tpu.memory_space<smem>>
    %c41 = arith.constant 41 : index
    %41 = memref.load %arg1[%c41] : memref<99xf32, #tpu.memory_space<smem>>
    %c42 = arith.constant 42 : index
    %42 = memref.load %arg1[%c42] : memref<99xf32, #tpu.memory_space<smem>>
    %c43 = arith.constant 43 : index
    %43 = memref.load %arg1[%c43] : memref<99xf32, #tpu.memory_space<smem>>
    %c44 = arith.constant 44 : index
    %44 = memref.load %arg1[%c44] : memref<99xf32, #tpu.memory_space<smem>>
    %c45 = arith.constant 45 : index
    %45 = memref.load %arg1[%c45] : memref<99xf32, #tpu.memory_space<smem>>
    %c46 = arith.constant 46 : index
    %46 = memref.load %arg1[%c46] : memref<99xf32, #tpu.memory_space<smem>>
    %c47 = arith.constant 47 : index
    %47 = memref.load %arg1[%c47] : memref<99xf32, #tpu.memory_space<smem>>
    %c48 = arith.constant 48 : index
    %48 = memref.load %arg1[%c48] : memref<99xf32, #tpu.memory_space<smem>>
    %c49 = arith.constant 49 : index
    %49 = memref.load %arg1[%c49] : memref<99xf32, #tpu.memory_space<smem>>
    %c50 = arith.constant 50 : index
    %50 = memref.load %arg1[%c50] : memref<99xf32, #tpu.memory_space<smem>>
    %c51 = arith.constant 51 : index
    %51 = memref.load %arg1[%c51] : memref<99xf32, #tpu.memory_space<smem>>
    %c52 = arith.constant 52 : index
    %52 = memref.load %arg1[%c52] : memref<99xf32, #tpu.memory_space<smem>>
    %c53 = arith.constant 53 : index
    %53 = memref.load %arg1[%c53] : memref<99xf32, #tpu.memory_space<smem>>
    %c54 = arith.constant 54 : index
    %54 = memref.load %arg1[%c54] : memref<99xf32, #tpu.memory_space<smem>>
    %c55 = arith.constant 55 : index
    %55 = memref.load %arg1[%c55] : memref<99xf32, #tpu.memory_space<smem>>
    %c56 = arith.constant 56 : index
    %56 = memref.load %arg1[%c56] : memref<99xf32, #tpu.memory_space<smem>>
    %c57 = arith.constant 57 : index
    %57 = memref.load %arg1[%c57] : memref<99xf32, #tpu.memory_space<smem>>
    %c58 = arith.constant 58 : index
    %58 = memref.load %arg1[%c58] : memref<99xf32, #tpu.memory_space<smem>>
    %c59 = arith.constant 59 : index
    %59 = memref.load %arg1[%c59] : memref<99xf32, #tpu.memory_space<smem>>
    %c60 = arith.constant 60 : index
    %60 = memref.load %arg1[%c60] : memref<99xf32, #tpu.memory_space<smem>>
    %c61 = arith.constant 61 : index
    %61 = memref.load %arg1[%c61] : memref<99xf32, #tpu.memory_space<smem>>
    %c62 = arith.constant 62 : index
    %62 = memref.load %arg1[%c62] : memref<99xf32, #tpu.memory_space<smem>>
    %c63 = arith.constant 63 : index
    %63 = memref.load %arg1[%c63] : memref<99xf32, #tpu.memory_space<smem>>
    %c64 = arith.constant 64 : index
    %64 = memref.load %arg1[%c64] : memref<99xf32, #tpu.memory_space<smem>>
    %c65 = arith.constant 65 : index
    %65 = memref.load %arg1[%c65] : memref<99xf32, #tpu.memory_space<smem>>
    %c66 = arith.constant 66 : index
    %66 = memref.load %arg1[%c66] : memref<99xf32, #tpu.memory_space<smem>>
    %c67 = arith.constant 67 : index
    %67 = memref.load %arg1[%c67] : memref<99xf32, #tpu.memory_space<smem>>
    %c68 = arith.constant 68 : index
    %68 = memref.load %arg1[%c68] : memref<99xf32, #tpu.memory_space<smem>>
    %c69 = arith.constant 69 : index
    %69 = memref.load %arg1[%c69] : memref<99xf32, #tpu.memory_space<smem>>
    %c70 = arith.constant 70 : index
    %70 = memref.load %arg1[%c70] : memref<99xf32, #tpu.memory_space<smem>>
    %c71 = arith.constant 71 : index
    %71 = memref.load %arg1[%c71] : memref<99xf32, #tpu.memory_space<smem>>
    %c72 = arith.constant 72 : index
    %72 = memref.load %arg1[%c72] : memref<99xf32, #tpu.memory_space<smem>>
    %c73 = arith.constant 73 : index
    %73 = memref.load %arg1[%c73] : memref<99xf32, #tpu.memory_space<smem>>
    %c74 = arith.constant 74 : index
    %74 = memref.load %arg1[%c74] : memref<99xf32, #tpu.memory_space<smem>>
    %c75 = arith.constant 75 : index
    %75 = memref.load %arg1[%c75] : memref<99xf32, #tpu.memory_space<smem>>
    %c76 = arith.constant 76 : index
    %76 = memref.load %arg1[%c76] : memref<99xf32, #tpu.memory_space<smem>>
    %c77 = arith.constant 77 : index
    %77 = memref.load %arg1[%c77] : memref<99xf32, #tpu.memory_space<smem>>
    %c78 = arith.constant 78 : index
    %78 = memref.load %arg1[%c78] : memref<99xf32, #tpu.memory_space<smem>>
    %c79 = arith.constant 79 : index
    %79 = memref.load %arg1[%c79] : memref<99xf32, #tpu.memory_space<smem>>
    %c80 = arith.constant 80 : index
    %80 = memref.load %arg1[%c80] : memref<99xf32, #tpu.memory_space<smem>>
    %c81 = arith.constant 81 : index
    %81 = memref.load %arg1[%c81] : memref<99xf32, #tpu.memory_space<smem>>
    %c82 = arith.constant 82 : index
    %82 = memref.load %arg1[%c82] : memref<99xf32, #tpu.memory_space<smem>>
    %c83 = arith.constant 83 : index
    %83 = memref.load %arg1[%c83] : memref<99xf32, #tpu.memory_space<smem>>
    %c84 = arith.constant 84 : index
    %84 = memref.load %arg1[%c84] : memref<99xf32, #tpu.memory_space<smem>>
    %c85 = arith.constant 85 : index
    %85 = memref.load %arg1[%c85] : memref<99xf32, #tpu.memory_space<smem>>
    %c86 = arith.constant 86 : index
    %86 = memref.load %arg1[%c86] : memref<99xf32, #tpu.memory_space<smem>>
    %c87 = arith.constant 87 : index
    %87 = memref.load %arg1[%c87] : memref<99xf32, #tpu.memory_space<smem>>
    %c88 = arith.constant 88 : index
    %88 = memref.load %arg1[%c88] : memref<99xf32, #tpu.memory_space<smem>>
    %c89 = arith.constant 89 : index
    %89 = memref.load %arg1[%c89] : memref<99xf32, #tpu.memory_space<smem>>
    %c90 = arith.constant 90 : index
    %90 = memref.load %arg1[%c90] : memref<99xf32, #tpu.memory_space<smem>>
    %c91 = arith.constant 91 : index
    %91 = memref.load %arg1[%c91] : memref<99xf32, #tpu.memory_space<smem>>
    %c92 = arith.constant 92 : index
    %92 = memref.load %arg1[%c92] : memref<99xf32, #tpu.memory_space<smem>>
    %c93 = arith.constant 93 : index
    %93 = memref.load %arg1[%c93] : memref<99xf32, #tpu.memory_space<smem>>
    %c94 = arith.constant 94 : index
    %94 = memref.load %arg1[%c94] : memref<99xf32, #tpu.memory_space<smem>>
    %c95 = arith.constant 95 : index
    %95 = memref.load %arg1[%c95] : memref<99xf32, #tpu.memory_space<smem>>
    %c96 = arith.constant 96 : index
    %96 = memref.load %arg1[%c96] : memref<99xf32, #tpu.memory_space<smem>>
    %c97 = arith.constant 97 : index
    %97 = memref.load %arg1[%c97] : memref<99xf32, #tpu.memory_space<smem>>
    %c98 = arith.constant 98 : index
    %98 = memref.load %arg1[%c98] : memref<99xf32, #tpu.memory_space<smem>>
    %99 = tpu.iota {dimensions = array<i32: 1>} : vector<1x256xi32>
    %c16_i32 = arith.constant 16 : i32
    %c0_i32 = arith.constant 0 : i32
    %100 = arith.cmpi eq, %c16_i32, %c0_i32 : i32
    %c1_i32 = arith.constant 1 : i32
    %101 = arith.select %100, %c1_i32, %c16_i32 : i32
    %102 = vector.broadcast %101 : i32 to vector<1x256xi32>
    %103 = arith.remsi %99, %102 : vector<1x256xi32>
    %c0_i32_0 = arith.constant 0 : i32
    %104 = vector.broadcast %c0_i32_0 : i32 to vector<1x256xi32>
    %105 = arith.cmpi ne, %103, %104 : vector<1x256xi32>
    %c0_i32_1 = arith.constant 0 : i32
    %106 = vector.broadcast %c0_i32_1 : i32 to vector<1x256xi32>
    %107 = arith.cmpi slt, %103, %106 : vector<1x256xi32>
    %c0_i32_2 = arith.constant 0 : i32
    %108 = arith.cmpi slt, %101, %c0_i32_2 : i32
    %109 = vector.broadcast %108 : i1 to vector<1x256xi1>
    %110 = vector.broadcast %109 : vector<1x256xi1> to vector<1x256xi1>
    %111 = arith.xori %107, %110 : vector<1x256xi1>
    %112 = arith.andi %111, %105 : vector<1x256xi1>
    %113 = vector.broadcast %101 : i32 to vector<1x256xi32>
    %114 = arith.addi %103, %113 : vector<1x256xi32>
    %115 = arith.select %112, %114, %103 : vector<1x256xi1>, vector<1x256xi32>
    %c3_i32 = arith.constant 3 : i32
    %116 = vector.broadcast %c3_i32 : i32 to vector<1x256xi32>
    %117 = arith.cmpi sge, %115, %116 : vector<1x256xi32>
    %c19_i32 = arith.constant 19 : i32
    %118 = vector.broadcast %c19_i32 : i32 to vector<1x256xi32>
    %119 = arith.cmpi slt, %115, %118 : vector<1x256xi32>
    %120 = arith.andi %117, %119 : vector<1x256xi1>
    %121 = arith.extui %120 : vector<1x256xi1> to vector<1x256xi32>
    %122 = arith.sitofp %121 : vector<1x256xi32> to vector<1x256xf32>
    %c2_i32 = arith.constant 2 : i32
    %123 = vector.broadcast %c2_i32 : i32 to vector<1x256xi32>
    %124 = arith.cmpi sge, %115, %123 : vector<1x256xi32>
    %c18_i32 = arith.constant 18 : i32
    %125 = vector.broadcast %c18_i32 : i32 to vector<1x256xi32>
    %126 = arith.cmpi slt, %115, %125 : vector<1x256xi32>
    %127 = arith.andi %124, %126 : vector<1x256xi1>
    %128 = arith.extui %127 : vector<1x256xi1> to vector<1x256xi32>
    %129 = arith.sitofp %128 : vector<1x256xi32> to vector<1x256xf32>
    %c1_i32_3 = arith.constant 1 : i32
    %130 = vector.broadcast %c1_i32_3 : i32 to vector<1x256xi32>
    %131 = arith.cmpi sge, %115, %130 : vector<1x256xi32>
    %c17_i32 = arith.constant 17 : i32
    %132 = vector.broadcast %c17_i32 : i32 to vector<1x256xi32>
    %133 = arith.cmpi slt, %115, %132 : vector<1x256xi32>
    %134 = arith.andi %131, %133 : vector<1x256xi1>
    %135 = arith.extui %134 : vector<1x256xi1> to vector<1x256xi32>
    %136 = arith.sitofp %135 : vector<1x256xi32> to vector<1x256xf32>
    %c0_i32_4 = arith.constant 0 : i32
    %137 = vector.broadcast %c0_i32_4 : i32 to vector<1x256xi32>
    %138 = arith.cmpi sge, %115, %137 : vector<1x256xi32>
    %c16_i32_5 = arith.constant 16 : i32
    %139 = vector.broadcast %c16_i32_5 : i32 to vector<1x256xi32>
    %140 = arith.cmpi slt, %115, %139 : vector<1x256xi32>
    %141 = arith.andi %138, %140 : vector<1x256xi1>
    %142 = arith.extui %141 : vector<1x256xi1> to vector<1x256xi32>
    %143 = arith.sitofp %142 : vector<1x256xi32> to vector<1x256xf32>
    %c-1_i32 = arith.constant -1 : i32
    %144 = vector.broadcast %c-1_i32 : i32 to vector<1x256xi32>
    %145 = arith.cmpi sge, %115, %144 : vector<1x256xi32>
    %c15_i32 = arith.constant 15 : i32
    %146 = vector.broadcast %c15_i32 : i32 to vector<1x256xi32>
    %147 = arith.cmpi slt, %115, %146 : vector<1x256xi32>
    %148 = arith.andi %145, %147 : vector<1x256xi1>
    %149 = arith.extui %148 : vector<1x256xi1> to vector<1x256xi32>
    %150 = arith.sitofp %149 : vector<1x256xi32> to vector<1x256xf32>
    %c-2_i32 = arith.constant -2 : i32
    %151 = vector.broadcast %c-2_i32 : i32 to vector<1x256xi32>
    %152 = arith.cmpi sge, %115, %151 : vector<1x256xi32>
    %c14_i32 = arith.constant 14 : i32
    %153 = vector.broadcast %c14_i32 : i32 to vector<1x256xi32>
    %154 = arith.cmpi slt, %115, %153 : vector<1x256xi32>
    %155 = arith.andi %152, %154 : vector<1x256xi1>
    %156 = arith.extui %155 : vector<1x256xi1> to vector<1x256xi32>
    %157 = arith.sitofp %156 : vector<1x256xi32> to vector<1x256xf32>
    %c-3_i32 = arith.constant -3 : i32
    %158 = vector.broadcast %c-3_i32 : i32 to vector<1x256xi32>
    %159 = arith.cmpi sge, %115, %158 : vector<1x256xi32>
    %c13_i32 = arith.constant 13 : i32
    %160 = vector.broadcast %c13_i32 : i32 to vector<1x256xi32>
    %161 = arith.cmpi slt, %115, %160 : vector<1x256xi32>
    %162 = arith.andi %159, %161 : vector<1x256xi1>
    %163 = arith.extui %162 : vector<1x256xi1> to vector<1x256xi32>
    %164 = arith.sitofp %163 : vector<1x256xi32> to vector<1x256xf32>
    %c0_i32_6 = arith.constant 0 : i32
    %cst = arith.constant 0.000000e+00 : f32
    %165 = vector.broadcast %cst : f32 to vector<1x256xf32>
    %cst_7 = arith.constant 0xFF800000 : f32
    %166 = vector.broadcast %cst_7 : f32 to vector<1x256xf32>
    %c0_i32_8 = arith.constant 0 : i32
    %c4_i32 = arith.constant 4 : i32
    %167 = arith.muli %c0_i32_8, %c4_i32 : i32
    %168 = tpu.assume_multiple %167, 4 : i32
    %169 = arith.index_cast %c0_i32_6 : i32 to index
    %170 = arith.index_cast %168 : i32 to index
    %c0_9 = arith.constant 0 : index
    %171 = vector.load %arg2[%169, %170, %c0_9] : memref<1x4x256xf32, #tpu.memory_space<vmem>>, vector<1x4x256xf32>
    %172 = vector.shape_cast %171 : vector<1x4x256xf32> to vector<4x256xf32>
    %cst_10 = arith.constant dense<0.000000e+00> : vector<256xf32>
    %173 = vector.multi_reduction <add>, %172, %cst_10 [0] : vector<4x256xf32> to vector<256xf32>
    %174 = vector.shape_cast %173 : vector<256xf32> to vector<1x256xf32>
    %175 = arith.addf %165, %174 : vector<1x256xf32>
    %cst_11 = arith.constant dense<0xFF800000> : vector<256xf32>
    %176 = vector.multi_reduction <maximumf>, %172, %cst_11 [0] : vector<4x256xf32> to vector<256xf32>
    %177 = vector.shape_cast %176 : vector<256xf32> to vector<1x256xf32>
    %178 = arith.maximumf %166, %177 : vector<1x256xf32>
    %c1_i32_12 = arith.constant 1 : i32
    %cst_13 = arith.constant 2.500000e-01 : f32
    %179 = vector.broadcast %cst_13 : f32 to vector<1x256xf32>
    %180 = arith.mulf %175, %179 : vector<1x256xf32>
    %cst_14 = arith.constant 0.000000e+00 : f32
    %181 = vector.broadcast %cst_14 : f32 to vector<1x51xf32>
    %182 = tpu.concatenate %181, %180, %181 in 1 : vector<1x51xf32>, vector<1x256xf32>, vector<1x51xf32> -> vector<1x358xf32>
    %183 = tpu.concatenate %181, %178, %181 in 1 : vector<1x51xf32>, vector<1x256xf32>, vector<1x51xf32> -> vector<1x358xf32>
    %184 = vector.broadcast %98 : f32 to vector<1x256xf32>
    %cst_15 = arith.constant 0.000000e+00 : f32
    %185 = vector.broadcast %cst_15 : f32 to vector<1x256xf32>
    %186 = vector.extract_strided_slice %182 {offsets = [0, 0], sizes = [1, 256], strides = [1, 1]} : vector<1x358xf32> to vector<1x256xf32>
    %187 = vector.broadcast %0 : f32 to vector<1x256xf32>
    %188 = arith.mulf %187, %186 : vector<1x256xf32>
    %189 = arith.addf %185, %188 : vector<1x256xf32>
    %190 = vector.extract_strided_slice %183 {offsets = [0, 0], sizes = [1, 256], strides = [1, 1]} : vector<1x358xf32> to vector<1x256xf32>
    %191 = vector.broadcast %49 : f32 to vector<1x256xf32>
    %192 = arith.mulf %191, %190 : vector<1x256xf32>
    %193 = arith.addf %189, %192 : vector<1x256xf32>
    %194 = vector.extract_strided_slice %182 {offsets = [0, 16], sizes = [1, 256], strides = [1, 1]} : vector<1x358xf32> to vector<1x256xf32>
    %195 = vector.broadcast %7 : f32 to vector<1x256xf32>
    %196 = arith.mulf %195, %194 : vector<1x256xf32>
    %197 = arith.addf %193, %196 : vector<1x256xf32>
    %198 = vector.extract_strided_slice %183 {offsets = [0, 16], sizes = [1, 256], strides = [1, 1]} : vector<1x358xf32> to vector<1x256xf32>
    %199 = vector.broadcast %56 : f32 to vector<1x256xf32>
    %200 = arith.mulf %199, %198 : vector<1x256xf32>
    %201 = arith.addf %197, %200 : vector<1x256xf32>
    %202 = vector.extract_strided_slice %182 {offsets = [0, 32], sizes = [1, 256], strides = [1, 1]} : vector<1x358xf32> to vector<1x256xf32>
    %203 = vector.broadcast %14 : f32 to vector<1x256xf32>
    %204 = arith.mulf %203, %202 : vector<1x256xf32>
    %205 = arith.addf %201, %204 : vector<1x256xf32>
    %206 = vector.extract_strided_slice %183 {offsets = [0, 32], sizes = [1, 256], strides = [1, 1]} : vector<1x358xf32> to vector<1x256xf32>
    %207 = vector.broadcast %63 : f32 to vector<1x256xf32>
    %208 = arith.mulf %207, %206 : vector<1x256xf32>
    %209 = arith.addf %205, %208 : vector<1x256xf32>
    %210 = vector.extract_strided_slice %182 {offsets = [0, 48], sizes = [1, 256], strides = [1, 1]} : vector<1x358xf32> to vector<1x256xf32>
    %211 = vector.broadcast %21 : f32 to vector<1x256xf32>
    %212 = arith.mulf %211, %210 : vector<1x256xf32>
    %213 = arith.addf %209, %212 : vector<1x256xf32>
    %214 = vector.extract_strided_slice %183 {offsets = [0, 48], sizes = [1, 256], strides = [1, 1]} : vector<1x358xf32> to vector<1x256xf32>
    %215 = vector.broadcast %70 : f32 to vector<1x256xf32>
    %216 = arith.mulf %215, %214 : vector<1x256xf32>
    %217 = arith.addf %213, %216 : vector<1x256xf32>
    %218 = vector.extract_strided_slice %182 {offsets = [0, 64], sizes = [1, 256], strides = [1, 1]} : vector<1x358xf32> to vector<1x256xf32>
    %219 = vector.broadcast %28 : f32 to vector<1x256xf32>
    %220 = arith.mulf %219, %218 : vector<1x256xf32>
    %221 = arith.addf %217, %220 : vector<1x256xf32>
    %222 = vector.extract_strided_slice %183 {offsets = [0, 64], sizes = [1, 256], strides = [1, 1]} : vector<1x358xf32> to vector<1x256xf32>
    %223 = vector.broadcast %77 : f32 to vector<1x256xf32>
    %224 = arith.mulf %223, %222 : vector<1x256xf32>
    %225 = arith.addf %221, %224 : vector<1x256xf32>
    %226 = vector.extract_strided_slice %182 {offsets = [0, 80], sizes = [1, 256], strides = [1, 1]} : vector<1x358xf32> to vector<1x256xf32>
    %227 = vector.broadcast %35 : f32 to vector<1x256xf32>
    %228 = arith.mulf %227, %226 : vector<1x256xf32>
    %229 = arith.addf %225, %228 : vector<1x256xf32>
    %230 = vector.extract_strided_slice %183 {offsets = [0, 80], sizes = [1, 256], strides = [1, 1]} : vector<1x358xf32> to vector<1x256xf32>
    %231 = vector.broadcast %84 : f32 to vector<1x256xf32>
    %232 = arith.mulf %231, %230 : vector<1x256xf32>
    %233 = arith.addf %229, %232 : vector<1x256xf32>
    %234 = vector.extract_strided_slice %182 {offsets = [0, 96], sizes = [1, 256], strides = [1, 1]} : vector<1x358xf32> to vector<1x256xf32>
    %235 = vector.broadcast %42 : f32 to vector<1x256xf32>
    %236 = arith.mulf %235, %234 : vector<1x256xf32>
    %237 = arith.addf %233, %236 : vector<1x256xf32>
    %238 = vector.extract_strided_slice %183 {offsets = [0, 96], sizes = [1, 256], strides = [1, 1]} : vector<1x358xf32> to vector<1x256xf32>
    %239 = vector.broadcast %91 : f32 to vector<1x256xf32>
    %240 = arith.mulf %239, %238 : vector<1x256xf32>
    %241 = arith.addf %237, %240 : vector<1x256xf32>
    %242 = arith.mulf %241, %122 : vector<1x256xf32>
    %243 = arith.addf %184, %242 : vector<1x256xf32>
    %cst_16 = arith.constant 0.000000e+00 : f32
    %244 = vector.broadcast %cst_16 : f32 to vector<1x256xf32>
    %245 = vector.extract_strided_slice %182 {offsets = [0, 1], sizes = [1, 256], strides = [1, 1]} : vector<1x358xf32> to vector<1x256xf32>
    %246 = vector.broadcast %1 : f32 to vector<1x256xf32>
    %247 = arith.mulf %246, %245 : vector<1x256xf32>
    %248 = arith.addf %244, %247 : vector<1x256xf32>
    %249 = vector.extract_strided_slice %183 {offsets = [0, 1], sizes = [1, 256], strides = [1, 1]} : vector<1x358xf32> to vector<1x256xf32>
    %250 = vector.broadcast %50 : f32 to vector<1x256xf32>
    %251 = arith.mulf %250, %249 : vector<1x256xf32>
    %252 = arith.addf %248, %251 : vector<1x256xf32>
    %253 = vector.extract_strided_slice %182 {offsets = [0, 17], sizes = [1, 256], strides = [1, 1]} : vector<1x358xf32> to vector<1x256xf32>
    %254 = vector.broadcast %8 : f32 to vector<1x256xf32>
    %255 = arith.mulf %254, %253 : vector<1x256xf32>
    %256 = arith.addf %252, %255 : vector<1x256xf32>
    %257 = vector.extract_strided_slice %183 {offsets = [0, 17], sizes = [1, 256], strides = [1, 1]} : vector<1x358xf32> to vector<1x256xf32>
    %258 = vector.broadcast %57 : f32 to vector<1x256xf32>
    %259 = arith.mulf %258, %257 : vector<1x256xf32>
    %260 = arith.addf %256, %259 : vector<1x256xf32>
    %261 = vector.extract_strided_slice %182 {offsets = [0, 33], sizes = [1, 256], strides = [1, 1]} : vector<1x358xf32> to vector<1x256xf32>
    %262 = vector.broadcast %15 : f32 to vector<1x256xf32>
    %263 = arith.mulf %262, %261 : vector<1x256xf32>
    %264 = arith.addf %260, %263 : vector<1x256xf32>
    %265 = vector.extract_strided_slice %183 {offsets = [0, 33], sizes = [1, 256], strides = [1, 1]} : vector<1x358xf32> to vector<1x256xf32>
    %266 = vector.broadcast %64 : f32 to vector<1x256xf32>
    %267 = arith.mulf %266, %265 : vector<1x256xf32>
    %268 = arith.addf %264, %267 : vector<1x256xf32>
    %269 = vector.extract_strided_slice %182 {offsets = [0, 49], sizes = [1, 256], strides = [1, 1]} : vector<1x358xf32> to vector<1x256xf32>
    %270 = vector.broadcast %22 : f32 to vector<1x256xf32>
    %271 = arith.mulf %270, %269 : vector<1x256xf32>
    %272 = arith.addf %268, %271 : vector<1x256xf32>
    %273 = vector.extract_strided_slice %183 {offsets = [0, 49], sizes = [1, 256], strides = [1, 1]} : vector<1x358xf32> to vector<1x256xf32>
    %274 = vector.broadcast %71 : f32 to vector<1x256xf32>
    %275 = arith.mulf %274, %273 : vector<1x256xf32>
    %276 = arith.addf %272, %275 : vector<1x256xf32>
    %277 = vector.extract_strided_slice %182 {offsets = [0, 65], sizes = [1, 256], strides = [1, 1]} : vector<1x358xf32> to vector<1x256xf32>
    %278 = vector.broadcast %29 : f32 to vector<1x256xf32>
    %279 = arith.mulf %278, %277 : vector<1x256xf32>
    %280 = arith.addf %276, %279 : vector<1x256xf32>
    %281 = vector.extract_strided_slice %183 {offsets = [0, 65], sizes = [1, 256], strides = [1, 1]} : vector<1x358xf32> to vector<1x256xf32>
    %282 = vector.broadcast %78 : f32 to vector<1x256xf32>
    %283 = arith.mulf %282, %281 : vector<1x256xf32>
    %284 = arith.addf %280, %283 : vector<1x256xf32>
    %285 = vector.extract_strided_slice %182 {offsets = [0, 81], sizes = [1, 256], strides = [1, 1]} : vector<1x358xf32> to vector<1x256xf32>
    %286 = vector.broadcast %36 : f32 to vector<1x256xf32>
    %287 = arith.mulf %286, %285 : vector<1x256xf32>
    %288 = arith.addf %284, %287 : vector<1x256xf32>
    %289 = vector.extract_strided_slice %183 {offsets = [0, 81], sizes = [1, 256], strides = [1, 1]} : vector<1x358xf32> to vector<1x256xf32>
    %290 = vector.broadcast %85 : f32 to vector<1x256xf32>
    %291 = arith.mulf %290, %289 : vector<1x256xf32>
    %292 = arith.addf %288, %291 : vector<1x256xf32>
    %293 = vector.extract_strided_slice %182 {offsets = [0, 97], sizes = [1, 256], strides = [1, 1]} : vector<1x358xf32> to vector<1x256xf32>
    %294 = vector.broadcast %43 : f32 to vector<1x256xf32>
    %295 = arith.mulf %294, %293 : vector<1x256xf32>
    %296 = arith.addf %292, %295 : vector<1x256xf32>
    %297 = vector.extract_strided_slice %183 {offsets = [0, 97], sizes = [1, 256], strides = [1, 1]} : vector<1x358xf32> to vector<1x256xf32>
    %298 = vector.broadcast %92 : f32 to vector<1x256xf32>
    %299 = arith.mulf %298, %297 : vector<1x256xf32>
    %300 = arith.addf %296, %299 : vector<1x256xf32>
    %301 = arith.mulf %300, %129 : vector<1x256xf32>
    %302 = arith.addf %243, %301 : vector<1x256xf32>
    %cst_17 = arith.constant 0.000000e+00 : f32
    %303 = vector.broadcast %cst_17 : f32 to vector<1x256xf32>
    %304 = vector.extract_strided_slice %182 {offsets = [0, 2], sizes = [1, 256], strides = [1, 1]} : vector<1x358xf32> to vector<1x256xf32>
    %305 = vector.broadcast %2 : f32 to vector<1x256xf32>
    %306 = arith.mulf %305, %304 : vector<1x256xf32>
    %307 = arith.addf %303, %306 : vector<1x256xf32>
    %308 = vector.extract_strided_slice %183 {offsets = [0, 2], sizes = [1, 256], strides = [1, 1]} : vector<1x358xf32> to vector<1x256xf32>
    %309 = vector.broadcast %51 : f32 to vector<1x256xf32>
    %310 = arith.mulf %309, %308 : vector<1x256xf32>
    %311 = arith.addf %307, %310 : vector<1x256xf32>
    %312 = vector.extract_strided_slice %182 {offsets = [0, 18], sizes = [1, 256], strides = [1, 1]} : vector<1x358xf32> to vector<1x256xf32>
    %313 = vector.broadcast %9 : f32 to vector<1x256xf32>
    %314 = arith.mulf %313, %312 : vector<1x256xf32>
    %315 = arith.addf %311, %314 : vector<1x256xf32>
    %316 = vector.extract_strided_slice %183 {offsets = [0, 18], sizes = [1, 256], strides = [1, 1]} : vector<1x358xf32> to vector<1x256xf32>
    %317 = vector.broadcast %58 : f32 to vector<1x256xf32>
    %318 = arith.mulf %317, %316 : vector<1x256xf32>
    %319 = arith.addf %315, %318 : vector<1x256xf32>
    %320 = vector.extract_strided_slice %182 {offsets = [0, 34], sizes = [1, 256], strides = [1, 1]} : vector<1x358xf32> to vector<1x256xf32>
    %321 = vector.broadcast %16 : f32 to vector<1x256xf32>
    %322 = arith.mulf %321, %320 : vector<1x256xf32>
    %323 = arith.addf %319, %322 : vector<1x256xf32>
    %324 = vector.extract_strided_slice %183 {offsets = [0, 34], sizes = [1, 256], strides = [1, 1]} : vector<1x358xf32> to vector<1x256xf32>
    %325 = vector.broadcast %65 : f32 to vector<1x256xf32>
    %326 = arith.mulf %325, %324 : vector<1x256xf32>
    %327 = arith.addf %323, %326 : vector<1x256xf32>
    %328 = vector.extract_strided_slice %182 {offsets = [0, 50], sizes = [1, 256], strides = [1, 1]} : vector<1x358xf32> to vector<1x256xf32>
    %329 = vector.broadcast %23 : f32 to vector<1x256xf32>
    %330 = arith.mulf %329, %328 : vector<1x256xf32>
    %331 = arith.addf %327, %330 : vector<1x256xf32>
    %332 = vector.extract_strided_slice %183 {offsets = [0, 50], sizes = [1, 256], strides = [1, 1]} : vector<1x358xf32> to vector<1x256xf32>
    %333 = vector.broadcast %72 : f32 to vector<1x256xf32>
    %334 = arith.mulf %333, %332 : vector<1x256xf32>
    %335 = arith.addf %331, %334 : vector<1x256xf32>
    %336 = vector.extract_strided_slice %182 {offsets = [0, 66], sizes = [1, 256], strides = [1, 1]} : vector<1x358xf32> to vector<1x256xf32>
    %337 = vector.broadcast %30 : f32 to vector<1x256xf32>
    %338 = arith.mulf %337, %336 : vector<1x256xf32>
    %339 = arith.addf %335, %338 : vector<1x256xf32>
    %340 = vector.extract_strided_slice %183 {offsets = [0, 66], sizes = [1, 256], strides = [1, 1]} : vector<1x358xf32> to vector<1x256xf32>
    %341 = vector.broadcast %79 : f32 to vector<1x256xf32>
    %342 = arith.mulf %341, %340 : vector<1x256xf32>
    %343 = arith.addf %339, %342 : vector<1x256xf32>
    %344 = vector.extract_strided_slice %182 {offsets = [0, 82], sizes = [1, 256], strides = [1, 1]} : vector<1x358xf32> to vector<1x256xf32>
    %345 = vector.broadcast %37 : f32 to vector<1x256xf32>
    %346 = arith.mulf %345, %344 : vector<1x256xf32>
    %347 = arith.addf %343, %346 : vector<1x256xf32>
    %348 = vector.extract_strided_slice %183 {offsets = [0, 82], sizes = [1, 256], strides = [1, 1]} : vector<1x358xf32> to vector<1x256xf32>
    %349 = vector.broadcast %86 : f32 to vector<1x256xf32>
    %350 = arith.mulf %349, %348 : vector<1x256xf32>
    %351 = arith.addf %347, %350 : vector<1x256xf32>
    %352 = vector.extract_strided_slice %182 {offsets = [0, 98], sizes = [1, 256], strides = [1, 1]} : vector<1x358xf32> to vector<1x256xf32>
    %353 = vector.broadcast %44 : f32 to vector<1x256xf32>
    %354 = arith.mulf %353, %352 : vector<1x256xf32>
    %355 = arith.addf %351, %354 : vector<1x256xf32>
    %356 = vector.extract_strided_slice %183 {offsets = [0, 98], sizes = [1, 256], strides = [1, 1]} : vector<1x358xf32> to vector<1x256xf32>
    %357 = vector.broadcast %93 : f32 to vector<1x256xf32>
    %358 = arith.mulf %357, %356 : vector<1x256xf32>
    %359 = arith.addf %355, %358 : vector<1x256xf32>
    %360 = arith.mulf %359, %136 : vector<1x256xf32>
    %361 = arith.addf %302, %360 : vector<1x256xf32>
    %cst_18 = arith.constant 0.000000e+00 : f32
    %362 = vector.broadcast %cst_18 : f32 to vector<1x256xf32>
    %363 = vector.extract_strided_slice %182 {offsets = [0, 3], sizes = [1, 256], strides = [1, 1]} : vector<1x358xf32> to vector<1x256xf32>
    %364 = vector.broadcast %3 : f32 to vector<1x256xf32>
    %365 = arith.mulf %364, %363 : vector<1x256xf32>
    %366 = arith.addf %362, %365 : vector<1x256xf32>
    %367 = vector.extract_strided_slice %183 {offsets = [0, 3], sizes = [1, 256], strides = [1, 1]} : vector<1x358xf32> to vector<1x256xf32>
    %368 = vector.broadcast %52 : f32 to vector<1x256xf32>
    %369 = arith.mulf %368, %367 : vector<1x256xf32>
    %370 = arith.addf %366, %369 : vector<1x256xf32>
    %371 = vector.extract_strided_slice %182 {offsets = [0, 19], sizes = [1, 256], strides = [1, 1]} : vector<1x358xf32> to vector<1x256xf32>
    %372 = vector.broadcast %10 : f32 to vector<1x256xf32>
    %373 = arith.mulf %372, %371 : vector<1x256xf32>
    %374 = arith.addf %370, %373 : vector<1x256xf32>
    %375 = vector.extract_strided_slice %183 {offsets = [0, 19], sizes = [1, 256], strides = [1, 1]} : vector<1x358xf32> to vector<1x256xf32>
    %376 = vector.broadcast %59 : f32 to vector<1x256xf32>
    %377 = arith.mulf %376, %375 : vector<1x256xf32>
    %378 = arith.addf %374, %377 : vector<1x256xf32>
    %379 = vector.extract_strided_slice %182 {offsets = [0, 35], sizes = [1, 256], strides = [1, 1]} : vector<1x358xf32> to vector<1x256xf32>
    %380 = vector.broadcast %17 : f32 to vector<1x256xf32>
    %381 = arith.mulf %380, %379 : vector<1x256xf32>
    %382 = arith.addf %378, %381 : vector<1x256xf32>
    %383 = vector.extract_strided_slice %183 {offsets = [0, 35], sizes = [1, 256], strides = [1, 1]} : vector<1x358xf32> to vector<1x256xf32>
    %384 = vector.broadcast %66 : f32 to vector<1x256xf32>
    %385 = arith.mulf %384, %383 : vector<1x256xf32>
    %386 = arith.addf %382, %385 : vector<1x256xf32>
    %387 = vector.extract_strided_slice %182 {offsets = [0, 51], sizes = [1, 256], strides = [1, 1]} : vector<1x358xf32> to vector<1x256xf32>
    %388 = vector.broadcast %24 : f32 to vector<1x256xf32>
    %389 = arith.mulf %388, %387 : vector<1x256xf32>
    %390 = arith.addf %386, %389 : vector<1x256xf32>
    %391 = vector.extract_strided_slice %183 {offsets = [0, 51], sizes = [1, 256], strides = [1, 1]} : vector<1x358xf32> to vector<1x256xf32>
    %392 = vector.broadcast %73 : f32 to vector<1x256xf32>
    %393 = arith.mulf %392, %391 : vector<1x256xf32>
    %394 = arith.addf %390, %393 : vector<1x256xf32>
    %395 = vector.extract_strided_slice %182 {offsets = [0, 67], sizes = [1, 256], strides = [1, 1]} : vector<1x358xf32> to vector<1x256xf32>
    %396 = vector.broadcast %31 : f32 to vector<1x256xf32>
    %397 = arith.mulf %396, %395 : vector<1x256xf32>
    %398 = arith.addf %394, %397 : vector<1x256xf32>
    %399 = vector.extract_strided_slice %183 {offsets = [0, 67], sizes = [1, 256], strides = [1, 1]} : vector<1x358xf32> to vector<1x256xf32>
    %400 = vector.broadcast %80 : f32 to vector<1x256xf32>
    %401 = arith.mulf %400, %399 : vector<1x256xf32>
    %402 = arith.addf %398, %401 : vector<1x256xf32>
    %403 = vector.extract_strided_slice %182 {offsets = [0, 83], sizes = [1, 256], strides = [1, 1]} : vector<1x358xf32> to vector<1x256xf32>
    %404 = vector.broadcast %38 : f32 to vector<1x256xf32>
    %405 = arith.mulf %404, %403 : vector<1x256xf32>
    %406 = arith.addf %402, %405 : vector<1x256xf32>
    %407 = vector.extract_strided_slice %183 {offsets = [0, 83], sizes = [1, 256], strides = [1, 1]} : vector<1x358xf32> to vector<1x256xf32>
    %408 = vector.broadcast %87 : f32 to vector<1x256xf32>
    %409 = arith.mulf %408, %407 : vector<1x256xf32>
    %410 = arith.addf %406, %409 : vector<1x256xf32>
    %411 = vector.extract_strided_slice %182 {offsets = [0, 99], sizes = [1, 256], strides = [1, 1]} : vector<1x358xf32> to vector<1x256xf32>
    %412 = vector.broadcast %45 : f32 to vector<1x256xf32>
    %413 = arith.mulf %412, %411 : vector<1x256xf32>
    %414 = arith.addf %410, %413 : vector<1x256xf32>
    %415 = vector.extract_strided_slice %183 {offsets = [0, 99], sizes = [1, 256], strides = [1, 1]} : vector<1x358xf32> to vector<1x256xf32>
    %416 = vector.broadcast %94 : f32 to vector<1x256xf32>
    %417 = arith.mulf %416, %415 : vector<1x256xf32>
    %418 = arith.addf %414, %417 : vector<1x256xf32>
    %419 = arith.mulf %418, %143 : vector<1x256xf32>
    %420 = arith.addf %361, %419 : vector<1x256xf32>
    %cst_19 = arith.constant 0.000000e+00 : f32
    %421 = vector.broadcast %cst_19 : f32 to vector<1x256xf32>
    %422 = vector.extract_strided_slice %182 {offsets = [0, 4], sizes = [1, 256], strides = [1, 1]} : vector<1x358xf32> to vector<1x256xf32>
    %423 = vector.broadcast %4 : f32 to vector<1x256xf32>
    %424 = arith.mulf %423, %422 : vector<1x256xf32>
    %425 = arith.addf %421, %424 : vector<1x256xf32>
    %426 = vector.extract_strided_slice %183 {offsets = [0, 4], sizes = [1, 256], strides = [1, 1]} : vector<1x358xf32> to vector<1x256xf32>
    %427 = vector.broadcast %53 : f32 to vector<1x256xf32>
    %428 = arith.mulf %427, %426 : vector<1x256xf32>
    %429 = arith.addf %425, %428 : vector<1x256xf32>
    %430 = vector.extract_strided_slice %182 {offsets = [0, 20], sizes = [1, 256], strides = [1, 1]} : vector<1x358xf32> to vector<1x256xf32>
    %431 = vector.broadcast %11 : f32 to vector<1x256xf32>
    %432 = arith.mulf %431, %430 : vector<1x256xf32>
    %433 = arith.addf %429, %432 : vector<1x256xf32>
    %434 = vector.extract_strided_slice %183 {offsets = [0, 20], sizes = [1, 256], strides = [1, 1]} : vector<1x358xf32> to vector<1x256xf32>
    %435 = vector.broadcast %60 : f32 to vector<1x256xf32>
    %436 = arith.mulf %435, %434 : vector<1x256xf32>
    %437 = arith.addf %433, %436 : vector<1x256xf32>
    %438 = vector.extract_strided_slice %182 {offsets = [0, 36], sizes = [1, 256], strides = [1, 1]} : vector<1x358xf32> to vector<1x256xf32>
    %439 = vector.broadcast %18 : f32 to vector<1x256xf32>
    %440 = arith.mulf %439, %438 : vector<1x256xf32>
    %441 = arith.addf %437, %440 : vector<1x256xf32>
    %442 = vector.extract_strided_slice %183 {offsets = [0, 36], sizes = [1, 256], strides = [1, 1]} : vector<1x358xf32> to vector<1x256xf32>
    %443 = vector.broadcast %67 : f32 to vector<1x256xf32>
    %444 = arith.mulf %443, %442 : vector<1x256xf32>
    %445 = arith.addf %441, %444 : vector<1x256xf32>
    %446 = vector.extract_strided_slice %182 {offsets = [0, 52], sizes = [1, 256], strides = [1, 1]} : vector<1x358xf32> to vector<1x256xf32>
    %447 = vector.broadcast %25 : f32 to vector<1x256xf32>
    %448 = arith.mulf %447, %446 : vector<1x256xf32>
    %449 = arith.addf %445, %448 : vector<1x256xf32>
    %450 = vector.extract_strided_slice %183 {offsets = [0, 52], sizes = [1, 256], strides = [1, 1]} : vector<1x358xf32> to vector<1x256xf32>
    %451 = vector.broadcast %74 : f32 to vector<1x256xf32>
    %452 = arith.mulf %451, %450 : vector<1x256xf32>
    %453 = arith.addf %449, %452 : vector<1x256xf32>
    %454 = vector.extract_strided_slice %182 {offsets = [0, 68], sizes = [1, 256], strides = [1, 1]} : vector<1x358xf32> to vector<1x256xf32>
    %455 = vector.broadcast %32 : f32 to vector<1x256xf32>
    %456 = arith.mulf %455, %454 : vector<1x256xf32>
    %457 = arith.addf %453, %456 : vector<1x256xf32>
    %458 = vector.extract_strided_slice %183 {offsets = [0, 68], sizes = [1, 256], strides = [1, 1]} : vector<1x358xf32> to vector<1x256xf32>
    %459 = vector.broadcast %81 : f32 to vector<1x256xf32>
    %460 = arith.mulf %459, %458 : vector<1x256xf32>
    %461 = arith.addf %457, %460 : vector<1x256xf32>
    %462 = vector.extract_strided_slice %182 {offsets = [0, 84], sizes = [1, 256], strides = [1, 1]} : vector<1x358xf32> to vector<1x256xf32>
    %463 = vector.broadcast %39 : f32 to vector<1x256xf32>
    %464 = arith.mulf %463, %462 : vector<1x256xf32>
    %465 = arith.addf %461, %464 : vector<1x256xf32>
    %466 = vector.extract_strided_slice %183 {offsets = [0, 84], sizes = [1, 256], strides = [1, 1]} : vector<1x358xf32> to vector<1x256xf32>
    %467 = vector.broadcast %88 : f32 to vector<1x256xf32>
    %468 = arith.mulf %467, %466 : vector<1x256xf32>
    %469 = arith.addf %465, %468 : vector<1x256xf32>
    %470 = vector.extract_strided_slice %182 {offsets = [0, 100], sizes = [1, 256], strides = [1, 1]} : vector<1x358xf32> to vector<1x256xf32>
    %471 = vector.broadcast %46 : f32 to vector<1x256xf32>
    %472 = arith.mulf %471, %470 : vector<1x256xf32>
    %473 = arith.addf %469, %472 : vector<1x256xf32>
    %474 = vector.extract_strided_slice %183 {offsets = [0, 100], sizes = [1, 256], strides = [1, 1]} : vector<1x358xf32> to vector<1x256xf32>
    %475 = vector.broadcast %95 : f32 to vector<1x256xf32>
    %476 = arith.mulf %475, %474 : vector<1x256xf32>
    %477 = arith.addf %473, %476 : vector<1x256xf32>
    %478 = arith.mulf %477, %150 : vector<1x256xf32>
    %479 = arith.addf %420, %478 : vector<1x256xf32>
    %cst_20 = arith.constant 0.000000e+00 : f32
    %480 = vector.broadcast %cst_20 : f32 to vector<1x256xf32>
    %481 = vector.extract_strided_slice %182 {offsets = [0, 5], sizes = [1, 256], strides = [1, 1]} : vector<1x358xf32> to vector<1x256xf32>
    %482 = vector.broadcast %5 : f32 to vector<1x256xf32>
    %483 = arith.mulf %482, %481 : vector<1x256xf32>
    %484 = arith.addf %480, %483 : vector<1x256xf32>
    %485 = vector.extract_strided_slice %183 {offsets = [0, 5], sizes = [1, 256], strides = [1, 1]} : vector<1x358xf32> to vector<1x256xf32>
    %486 = vector.broadcast %54 : f32 to vector<1x256xf32>
    %487 = arith.mulf %486, %485 : vector<1x256xf32>
    %488 = arith.addf %484, %487 : vector<1x256xf32>
    %489 = vector.extract_strided_slice %182 {offsets = [0, 21], sizes = [1, 256], strides = [1, 1]} : vector<1x358xf32> to vector<1x256xf32>
    %490 = vector.broadcast %12 : f32 to vector<1x256xf32>
    %491 = arith.mulf %490, %489 : vector<1x256xf32>
    %492 = arith.addf %488, %491 : vector<1x256xf32>
    %493 = vector.extract_strided_slice %183 {offsets = [0, 21], sizes = [1, 256], strides = [1, 1]} : vector<1x358xf32> to vector<1x256xf32>
    %494 = vector.broadcast %61 : f32 to vector<1x256xf32>
    %495 = arith.mulf %494, %493 : vector<1x256xf32>
    %496 = arith.addf %492, %495 : vector<1x256xf32>
    %497 = vector.extract_strided_slice %182 {offsets = [0, 37], sizes = [1, 256], strides = [1, 1]} : vector<1x358xf32> to vector<1x256xf32>
    %498 = vector.broadcast %19 : f32 to vector<1x256xf32>
    %499 = arith.mulf %498, %497 : vector<1x256xf32>
    %500 = arith.addf %496, %499 : vector<1x256xf32>
    %501 = vector.extract_strided_slice %183 {offsets = [0, 37], sizes = [1, 256], strides = [1, 1]} : vector<1x358xf32> to vector<1x256xf32>
    %502 = vector.broadcast %68 : f32 to vector<1x256xf32>
    %503 = arith.mulf %502, %501 : vector<1x256xf32>
    %504 = arith.addf %500, %503 : vector<1x256xf32>
    %505 = vector.extract_strided_slice %182 {offsets = [0, 53], sizes = [1, 256], strides = [1, 1]} : vector<1x358xf32> to vector<1x256xf32>
    %506 = vector.broadcast %26 : f32 to vector<1x256xf32>
    %507 = arith.mulf %506, %505 : vector<1x256xf32>
    %508 = arith.addf %504, %507 : vector<1x256xf32>
    %509 = vector.extract_strided_slice %183 {offsets = [0, 53], sizes = [1, 256], strides = [1, 1]} : vector<1x358xf32> to vector<1x256xf32>
    %510 = vector.broadcast %75 : f32 to vector<1x256xf32>
    %511 = arith.mulf %510, %509 : vector<1x256xf32>
    %512 = arith.addf %508, %511 : vector<1x256xf32>
    %513 = vector.extract_strided_slice %182 {offsets = [0, 69], sizes = [1, 256], strides = [1, 1]} : vector<1x358xf32> to vector<1x256xf32>
    %514 = vector.broadcast %33 : f32 to vector<1x256xf32>
    %515 = arith.mulf %514, %513 : vector<1x256xf32>
    %516 = arith.addf %512, %515 : vector<1x256xf32>
    %517 = vector.extract_strided_slice %183 {offsets = [0, 69], sizes = [1, 256], strides = [1, 1]} : vector<1x358xf32> to vector<1x256xf32>
    %518 = vector.broadcast %82 : f32 to vector<1x256xf32>
    %519 = arith.mulf %518, %517 : vector<1x256xf32>
    %520 = arith.addf %516, %519 : vector<1x256xf32>
    %521 = vector.extract_strided_slice %182 {offsets = [0, 85], sizes = [1, 256], strides = [1, 1]} : vector<1x358xf32> to vector<1x256xf32>
    %522 = vector.broadcast %40 : f32 to vector<1x256xf32>
    %523 = arith.mulf %522, %521 : vector<1x256xf32>
    %524 = arith.addf %520, %523 : vector<1x256xf32>
    %525 = vector.extract_strided_slice %183 {offsets = [0, 85], sizes = [1, 256], strides = [1, 1]} : vector<1x358xf32> to vector<1x256xf32>
    %526 = vector.broadcast %89 : f32 to vector<1x256xf32>
    %527 = arith.mulf %526, %525 : vector<1x256xf32>
    %528 = arith.addf %524, %527 : vector<1x256xf32>
    %529 = vector.extract_strided_slice %182 {offsets = [0, 101], sizes = [1, 256], strides = [1, 1]} : vector<1x358xf32> to vector<1x256xf32>
    %530 = vector.broadcast %47 : f32 to vector<1x256xf32>
    %531 = arith.mulf %530, %529 : vector<1x256xf32>
    %532 = arith.addf %528, %531 : vector<1x256xf32>
    %533 = vector.extract_strided_slice %183 {offsets = [0, 101], sizes = [1, 256], strides = [1, 1]} : vector<1x358xf32> to vector<1x256xf32>
    %534 = vector.broadcast %96 : f32 to vector<1x256xf32>
    %535 = arith.mulf %534, %533 : vector<1x256xf32>
    %536 = arith.addf %532, %535 : vector<1x256xf32>
    %537 = arith.mulf %536, %157 : vector<1x256xf32>
    %538 = arith.addf %479, %537 : vector<1x256xf32>
    %cst_21 = arith.constant 0.000000e+00 : f32
    %539 = vector.broadcast %cst_21 : f32 to vector<1x256xf32>
    %540 = vector.extract_strided_slice %182 {offsets = [0, 6], sizes = [1, 256], strides = [1, 1]} : vector<1x358xf32> to vector<1x256xf32>
    %541 = vector.broadcast %6 : f32 to vector<1x256xf32>
    %542 = arith.mulf %541, %540 : vector<1x256xf32>
    %543 = arith.addf %539, %542 : vector<1x256xf32>
    %544 = vector.extract_strided_slice %183 {offsets = [0, 6], sizes = [1, 256], strides = [1, 1]} : vector<1x358xf32> to vector<1x256xf32>
    %545 = vector.broadcast %55 : f32 to vector<1x256xf32>
    %546 = arith.mulf %545, %544 : vector<1x256xf32>
    %547 = arith.addf %543, %546 : vector<1x256xf32>
    %548 = vector.extract_strided_slice %182 {offsets = [0, 22], sizes = [1, 256], strides = [1, 1]} : vector<1x358xf32> to vector<1x256xf32>
    %549 = vector.broadcast %13 : f32 to vector<1x256xf32>
    %550 = arith.mulf %549, %548 : vector<1x256xf32>
    %551 = arith.addf %547, %550 : vector<1x256xf32>
    %552 = vector.extract_strided_slice %183 {offsets = [0, 22], sizes = [1, 256], strides = [1, 1]} : vector<1x358xf32> to vector<1x256xf32>
    %553 = vector.broadcast %62 : f32 to vector<1x256xf32>
    %554 = arith.mulf %553, %552 : vector<1x256xf32>
    %555 = arith.addf %551, %554 : vector<1x256xf32>
    %556 = vector.extract_strided_slice %182 {offsets = [0, 38], sizes = [1, 256], strides = [1, 1]} : vector<1x358xf32> to vector<1x256xf32>
    %557 = vector.broadcast %20 : f32 to vector<1x256xf32>
    %558 = arith.mulf %557, %556 : vector<1x256xf32>
    %559 = arith.addf %555, %558 : vector<1x256xf32>
    %560 = vector.extract_strided_slice %183 {offsets = [0, 38], sizes = [1, 256], strides = [1, 1]} : vector<1x358xf32> to vector<1x256xf32>
    %561 = vector.broadcast %69 : f32 to vector<1x256xf32>
    %562 = arith.mulf %561, %560 : vector<1x256xf32>
    %563 = arith.addf %559, %562 : vector<1x256xf32>
    %564 = vector.extract_strided_slice %182 {offsets = [0, 54], sizes = [1, 256], strides = [1, 1]} : vector<1x358xf32> to vector<1x256xf32>
    %565 = vector.broadcast %27 : f32 to vector<1x256xf32>
    %566 = arith.mulf %565, %564 : vector<1x256xf32>
    %567 = arith.addf %563, %566 : vector<1x256xf32>
    %568 = vector.extract_strided_slice %183 {offsets = [0, 54], sizes = [1, 256], strides = [1, 1]} : vector<1x358xf32> to vector<1x256xf32>
    %569 = vector.broadcast %76 : f32 to vector<1x256xf32>
    %570 = arith.mulf %569, %568 : vector<1x256xf32>
    %571 = arith.addf %567, %570 : vector<1x256xf32>
    %572 = vector.extract_strided_slice %182 {offsets = [0, 70], sizes = [1, 256], strides = [1, 1]} : vector<1x358xf32> to vector<1x256xf32>
    %573 = vector.broadcast %34 : f32 to vector<1x256xf32>
    %574 = arith.mulf %573, %572 : vector<1x256xf32>
    %575 = arith.addf %571, %574 : vector<1x256xf32>
    %576 = vector.extract_strided_slice %183 {offsets = [0, 70], sizes = [1, 256], strides = [1, 1]} : vector<1x358xf32> to vector<1x256xf32>
    %577 = vector.broadcast %83 : f32 to vector<1x256xf32>
    %578 = arith.mulf %577, %576 : vector<1x256xf32>
    %579 = arith.addf %575, %578 : vector<1x256xf32>
    %580 = vector.extract_strided_slice %182 {offsets = [0, 86], sizes = [1, 256], strides = [1, 1]} : vector<1x358xf32> to vector<1x256xf32>
    %581 = vector.broadcast %41 : f32 to vector<1x256xf32>
    %582 = arith.mulf %581, %580 : vector<1x256xf32>
    %583 = arith.addf %579, %582 : vector<1x256xf32>
    %584 = vector.extract_strided_slice %183 {offsets = [0, 86], sizes = [1, 256], strides = [1, 1]} : vector<1x358xf32> to vector<1x256xf32>
    %585 = vector.broadcast %90 : f32 to vector<1x256xf32>
    %586 = arith.mulf %585, %584 : vector<1x256xf32>
    %587 = arith.addf %583, %586 : vector<1x256xf32>
    %588 = vector.extract_strided_slice %182 {offsets = [0, 102], sizes = [1, 256], strides = [1, 1]} : vector<1x358xf32> to vector<1x256xf32>
    %589 = vector.broadcast %48 : f32 to vector<1x256xf32>
    %590 = arith.mulf %589, %588 : vector<1x256xf32>
    %591 = arith.addf %587, %590 : vector<1x256xf32>
    %592 = vector.extract_strided_slice %183 {offsets = [0, 102], sizes = [1, 256], strides = [1, 1]} : vector<1x358xf32> to vector<1x256xf32>
    %593 = vector.broadcast %97 : f32 to vector<1x256xf32>
    %594 = arith.mulf %593, %592 : vector<1x256xf32>
    %595 = arith.addf %591, %594 : vector<1x256xf32>
    %596 = arith.mulf %595, %164 : vector<1x256xf32>
    %597 = arith.addf %538, %596 : vector<1x256xf32>
    %598 = arith.negf %597 : vector<1x256xf32>
    %599 = math.exp %598 : vector<1x256xf32>
    %cst_22 = arith.constant 1.000000e+00 : f32
    %600 = vector.broadcast %cst_22 : f32 to vector<1x256xf32>
    %601 = arith.addf %600, %599 : vector<1x256xf32>
    %602 = arith.divf %600, %601 : vector<1x256xf32>
    %c0_i32_23 = arith.constant 0 : i32
    %c4_i32_24 = arith.constant 4 : i32
    %603 = arith.muli %c0_i32_23, %c4_i32_24 : i32
    %604 = tpu.assume_multiple %603, 4 : i32
    %605 = arith.index_cast %c0_i32_6 : i32 to index
    %606 = arith.index_cast %604 : i32 to index
    %c0_25 = arith.constant 0 : index
    %607 = vector.load %arg2[%605, %606, %c0_25] : memref<1x4x256xf32, #tpu.memory_space<vmem>>, vector<1x4x256xf32>
    %608 = vector.shape_cast %607 : vector<1x4x256xf32> to vector<4x256xf32>
    %609 = vector.broadcast %602 : vector<1x256xf32> to vector<4x256xf32>
    %610 = arith.mulf %608, %609 : vector<4x256xf32>
    %611 = arith.index_cast %c0_i32_6 : i32 to index
    %612 = arith.index_cast %604 : i32 to index
    %c0_26 = arith.constant 0 : index
    %613 = vector.load %arg3[%611, %612, %c0_26] : memref<1x4x256xf32, #tpu.memory_space<vmem>>, vector<1x4x256xf32>
    %614 = vector.shape_cast %613 : vector<1x4x256xf32> to vector<4x256xf32>
    %615 = vector.shape_cast %610 : vector<4x256xf32> to vector<1x4x256xf32>
    tpu.vector_store %arg3[%611, %612, %c0_26], %615 {strides = array<i32>} : memref<1x4x256xf32, #tpu.memory_space<vmem>>, vector<1x4x256xf32>,
    %c1_i32_27 = arith.constant 1 : i32
    %c1_i32_28 = arith.constant 1 : i32
    return
  }
  func.func @transform_0(%arg0: i32) -> i32 {
    %c0_i32 = arith.constant 0 : i32
    %c0_i32_0 = arith.constant 0 : i32
    return %c0_i32 : i32
  }
  func.func @transform_1(%arg0: i32) -> (i32, i32, i32) {
    %c0_i32 = arith.constant 0 : i32
    %c0_i32_0 = arith.constant 0 : i32
    %c0_i32_1 = arith.constant 0 : i32
    return %arg0, %c0_i32, %c0_i32_0 : i32, i32, i32
  }
  func.func @transform_2(%arg0: i32) -> (i32, i32, i32) {
    %c0_i32 = arith.constant 0 : i32
    %c0_i32_0 = arith.constant 0 : i32
    %c0_i32_1 = arith.constant 0 : i32
    return %arg0, %c0_i32, %c0_i32_0 : i32, i32, i32
  }
}

</mosaic_0001>

<llo_original>
// kernel: tpu_custom_call.1
$region0: #{tpu_custom_call.1}
  #allocation0 [shape = 'u32[]', space=smem, size = 0x4, offset = 0x4, fixed_abs, tag = 'smem constant byte address 0x4 - core index']
  #allocation1 [shape = 'u32[144,128]{1,0:T(1,128)}', space=vmem, size = 0x12000, scoped, tag = 'internal scratch']
  %s0 = inlined_call_operand.hbm [shape: f32[99], index: 0, kind: input, shape index: {}]
  %s1 = inlined_call_operand.hbm [shape: f32[2,4,256], index: 1, kind: input, shape index: {}]
  %s2 = inlined_call_operand.hbm [shape: f32[2,4,256], index: 2, kind: output, shape index: {}]
  %s3 = sld [smem:[#allocation0]]
  $region49: #{tpu_custom_call.1} parent=0
    _
  %s5 = ssub.s32 1, %s3
  %s6 = scalar_select 0, %s5, %s3
  $region1: #{tpu_custom_call.1} parent=0
    #allocation2 [shape = 'u8[512]{0}', space=smem, size = 0x200, scoped, tag = 'input window, operand 0, single buffered']
    #allocation3 [shape = 's32[2]{0}', space=sflag, size = 0x8, scoped, tag = 'scoped memory for tpu_custom_call.1']
    #allocation4 [shape = 's32[2]{0}', space=sflag, size = 0x8, scoped, tag = 'scoped memory for tpu_custom_call.1']
    #allocation5 [shape = 's32[2]{0}', space=sflag, size = 0x8, scoped, tag = 'scoped memory for tpu_custom_call.1']
    #allocation6 [shape = 'u8[8192]{0}', space=vmem, size = 0x2000, scoped, tag = 'input window, operand 1']
    #allocation7 [shape = 'u8[8192]{0}', space=vmem, size = 0x2000, scoped, tag = 'output window, operand 0']
    %7 = vsyncpa [#allocation5], 0
    %8 = vsyncpa [#allocation3], 0
    %s9 = scalar_lea.sflag [#allocation3], 1
    %10 = vsyncpa %s9, 0
    %11 = vsyncpa [#allocation4], 0
    %s12 = scalar_lea.sflag [#allocation4], 1
    %13 = vsyncpa %s12, 0
    loop: start=0, step=1, limit=4
    $region2: #{tpu_custom_call.1} parent=1 // loop_pre_header
      _
    $region3: #{tpu_custom_call.1} parent=1 // loop_header
      %s15 = sphi 0, %s19
      %p16 = scmp.ge.s32.totalorder %s15, 4
      %s23 = sphi 0, %s23
      %s25 = sphi 0, %s23
      %s26 = sphi 0, %s25
      %s40 = sphi 0, %s26
      %s46 = sphi 0, %s48
      %s49 = sphi 0, %s46
      %s50 = sphi 0, %s49
      %s66 = sphi 0, %s50
      %s72 = sphi 0, %s74
      %s75 = sphi 0, %s72
      %s76 = sphi 0, %s75
      %s92 = sphi 0, %s76
    $region4: #{tpu_custom_call.1} parent=1 // loop_header_branch
      %18 = sbr.rel (%p16) target = $region8
    $region5: #{tpu_custom_call.1} parent=1 // loop_body
      %s20 = ssub.s32 %s15, 1
      %s21 = ssub.s32 %s15, 2
      %s22 = sadd.s32 %s15, 1
      %s24 = sadd.s32 %s23, 1
      %p27 = scmp.eq.s32.totalorder %s15, 1
      %p28 = scmp.ne.s32.totalorder %s23, %s25
      %p29 = scmp.eq.s32.totalorder %s15, 0
      %p30 = por %p28, %p29
      %p31 = scmp.ne.s32.totalorder %s23, %s25
      %p32 = scmp.eq.s32.totalorder %s20, 1
      %p33 = por %p31, %p32
      %p34 = scmp.ne.s32.totalorder %s25, %s26
      %p35 = scmp.eq.s32.totalorder %s20, 0
      %p36 = por %p34, %p35
      %p37 = scmp.ne.s32.totalorder %s25, %s26
      %p38 = scmp.eq.s32.totalorder %s21, 1
      %p39 = por %p37, %p38
      %p41 = scmp.ne.s32.totalorder %s26, %s40
      %p42 = scmp.eq.s32.totalorder %s21, 0
      %p43 = por %p41, %p42
      %s44 = ssub.s32 %s15, %s22
      %p45 = scmp.eq.s32.totalorder %s44, 0
      %s47 = sadd.s32 %s46, 1
      %s48 = scalar_select %p45, %s46, %s47
      %p51 = pneg %p45
      %p52 = scmp.eq.s32.totalorder %s15, 1
      %p53 = por %p51, %p52
      %p54 = scmp.ne.s32.totalorder %s46, %s49
      %p55 = scmp.eq.s32.totalorder %s15, 0
      %p56 = por %p54, %p55
      %p57 = scmp.ne.s32.totalorder %s46, %s49
      %p58 = scmp.eq.s32.totalorder %s20, 1
      %p59 = por %p57, %p58
      %p60 = scmp.ne.s32.totalorder %s49, %s50
      %p61 = scmp.eq.s32.totalorder %s20, 0
      %p62 = por %p60, %p61
      %p63 = scmp.ne.s32.totalorder %s49, %s50
      %p64 = scmp.eq.s32.totalorder %s21, 1
      %p65 = por %p63, %p64
      %p67 = scmp.ne.s32.totalorder %s50, %s66
      %p68 = scmp.eq.s32.totalorder %s21, 0
      %p69 = por %p67, %p68
      %s70 = ssub.s32 %s15, %s22
      %p71 = scmp.eq.s32.totalorder %s70, 0
      %s73 = sadd.s32 %s72, 1
      %s74 = scalar_select %p71, %s72, %s73
      %p77 = pneg %p71
      %p78 = scmp.eq.s32.totalorder %s15, 1
      %p79 = por %p77, %p78
      %p80 = scmp.ne.s32.totalorder %s72, %s75
      %p81 = scmp.eq.s32.totalorder %s15, 0
      %p82 = por %p80, %p81
      %p83 = scmp.ne.s32.totalorder %s72, %s75
      %p84 = scmp.eq.s32.totalorder %s20, 1
      %p85 = por %p83, %p84
      %p86 = scmp.ne.s32.totalorder %s75, %s76
      %p87 = scmp.eq.s32.totalorder %s20, 0
      %p88 = por %p86, %p87
      %p89 = scmp.ne.s32.totalorder %s75, %s76
      %p90 = scmp.eq.s32.totalorder %s21, 1
      %p91 = por %p89, %p90
      %p93 = scmp.ne.s32.totalorder %s76, %s92
      %p94 = scmp.eq.s32.totalorder %s21, 0
      %p95 = por %p93, %p94
      %p96 = scmp.le.s32.totalorder 1, %s15
      %p97 = scmp.lt.s32.totalorder %s15, 3
      %p98 = pnand %p96, %p97
      %p99 = pneg %p98
      // Predicated region
      $region9: #{tpu_custom_call.1} parent=5 // pred_check
        _
      $region10: #{tpu_custom_call.1} parent=5 // pred_check_branch
        %101 = sbr.rel (%p98) target = $region12
      $region11: #{tpu_custom_call.1} parent=5 // pred_region
        %s102 = ssub.s32 %s15, 1
        // Predicated region
        $region13: #{tpu_custom_call.1} parent=11 // pred_check
          %p103 = pneg %p36
        $region14: #{tpu_custom_call.1} parent=11 // pred_check_branch
          %105 = sbr.rel (%p103) target = $region16
        $region15: #{tpu_custom_call.1} parent=11 // pred_region
          %s107 = ssub.s32 16, 16
          %108 = vsyncadd [#allocation5], %s107
          %111 = dma.hbm_to_smem %s0, 16, [#allocation2], [#allocation5]
        $region16: #{tpu_custom_call.1} parent=11 // pred_fallthru
          _
      $region12: #{tpu_custom_call.1} parent=5 // pred_fallthru
        _
      %p112 = scmp.lt.s32.totalorder %s15, 2
      // Predicated region
      $region17: #{tpu_custom_call.1} parent=5 // pred_check
        %p113 = pneg %p112
      $region18: #{tpu_custom_call.1} parent=5 // pred_check_branch
        %115 = sbr.rel (%p113) target = $region20
      $region19: #{tpu_custom_call.1} parent=5 // pred_region
        // Predicated region
        $region21: #{tpu_custom_call.1} parent=19 // pred_check
          %p116 = pneg %p56
        $region22: #{tpu_custom_call.1} parent=19 // pred_check_branch
          %118 = sbr.rel (%p116) target = $region24
        $region23: #{tpu_custom_call.1} parent=19 // pred_region
          %s119 = sand.u32 %s46, 1
          %s120 = scalar_lea.sflag [#allocation3], %s119
          %s121 = sand.u32 %s46, 1
          %s122 = smul.addr %s121, 8
          %s123 = scalar_lea.vmem [#allocation6], %s122
          %s125 = ssub.s32 128, 128
          %126 = vsyncadd %s120, %s125
          %s127 = smul.addr %s15, 2
          %s128 = smul.addr %s127, 64
          %s129 = scalar_lea.hbm %s1, %s128
          %s131 = sshll.u32 %s123, 4
          %s132 = int_to_ptr.vmem [resolvable:$true] %s131
          %134 = dma.hbm_to_vmem [thread:$0]  %s129, 128, %s132, %s120
        $region24: #{tpu_custom_call.1} parent=19 // pred_fallthru
          _
      $region20: #{tpu_custom_call.1} parent=5 // pred_fallthru
        _
      %p135 = scmp.le.s32.totalorder 1, %s15
      %p136 = scmp.lt.s32.totalorder %s15, 3
      %p137 = pnand %p135, %p136
      %p138 = pneg %p137
      // Predicated region
      $region25: #{tpu_custom_call.1} parent=5 // pred_check
        _
      $region26: #{tpu_custom_call.1} parent=5 // pred_check_branch
        %140 = sbr.rel (%p137) target = $region28
      $region27: #{tpu_custom_call.1} parent=5 // pred_region
        %s141 = ssub.s32 %s15, 1
        // Predicated region
        $region29: #{tpu_custom_call.1} parent=27 // pred_check
          %p142 = pneg %p36
        $region30: #{tpu_custom_call.1} parent=27 // pred_check_branch
          %144 = sbr.rel (%p142) target = $region32
        $region31: #{tpu_custom_call.1} parent=27 // pred_region
          %145 = dma.done [#allocation5], 16
        $region32: #{tpu_custom_call.1} parent=27 // pred_fallthru
          _
        %s146 = sand.u32 %s49, 1
        %s147 = scalar_lea.sflag [#allocation3], %s146
        %s148 = sand.u32 %s49, 1
        %s149 = smul.addr %s148, 8
        %s150 = scalar_lea.vmem [#allocation6], %s149
        // Predicated region
        $region33: #{tpu_custom_call.1} parent=27 // pred_check
          %p151 = pneg %p62
        $region34: #{tpu_custom_call.1} parent=27 // pred_check_branch
          %153 = sbr.rel (%p151) target = $region36
        $region35: #{tpu_custom_call.1} parent=27 // pred_region
          %154 = dma.done %s147, 128
        $region36: #{tpu_custom_call.1} parent=27 // pred_fallthru
          _
        %155 = sfence
        %p156 = pneg %p36
        %p157 = pneg %p33
        %s158 = sand.u32 %s49, 1
        %s159 = scalar_lea.sflag [#allocation3], %s158
        %s160 = sand.u32 %s49, 1
        %s161 = smul.addr %s160, 8
        %s162 = scalar_lea.vmem [#allocation6], %s161
        %p163 = pneg %p62
        %p164 = pneg %p59
        %p165 = pneg %p88
        %p166 = pneg %p85
        %s167 = sand.u32 %s75, 1
        %s168 = scalar_lea.sflag [#allocation4], %s167
        %s169 = sand.u32 %s75, 1
        %s170 = smul.addr %s169, 8
        %s171 = scalar_lea.vmem [#allocation7], %s170
        %s172 = sld [smem:[#allocation2]]
        %s173 = sld [smem:[#allocation2 + $0x1]]
        %s174 = sld [smem:[#allocation2 + $0x2]]
        %s175 = sld [smem:[#allocation2 + $0x3]]
        %s176 = sld [smem:[#allocation2 + $0x4]]
        %s177 = sld [smem:[#allocation2 + $0x5]]
        %s178 = sld [smem:[#allocation2 + $0x6]]
        %s179 = sld [smem:[#allocation2 + $0x7]]
        %s180 = sld [smem:[#allocation2 + $0x8]]
        %s181 = sld [smem:[#allocation2 + $0x9]]
        %s182 = sld [smem:[#allocation2 + $0xa]]
        %s183 = sld [smem:[#allocation2 + $0xb]]
        %s184 = sld [smem:[#allocation2 + $0xc]]
        %s185 = sld [smem:[#allocation2 + $0xd]]
        %s186 = sld [smem:[#allocation2 + $0xe]]
        %s187 = sld [smem:[#allocation2 + $0xf]]
        %s188 = sld [smem:[#allocation2 + $0x10]]
        %s189 = sld [smem:[#allocation2 + $0x11]]
        %s190 = sld [smem:[#allocation2 + $0x12]]
        %s191 = sld [smem:[#allocation2 + $0x13]]
        %s192 = sld [smem:[#allocation2 + $0x14]]
        %s193 = sld [smem:[#allocation2 + $0x15]]
        %s194 = sld [smem:[#allocation2 + $0x16]]
        %s195 = sld [smem:[#allocation2 + $0x17]]
        %s196 = sld [smem:[#allocation2 + $0x18]]
        %s197 = sld [smem:[#allocation2 + $0x19]]
        %s198 = sld [smem:[#allocation2 + $0x1a]]
        %s199 = sld [smem:[#allocation2 + $0x1b]]
        %s200 = sld [smem:[#allocation2 + $0x1c]]
        %s201 = sld [smem:[#allocation2 + $0x1d]]
        %s202 = sld [smem:[#allocation2 + $0x1e]]
        %s203 = sld [smem:[#allocation2 + $0x1f]]
        %s204 = sld [smem:[#allocation2 + $0x20]]
        %s205 = sld [smem:[#allocation2 + $0x21]]
        %s206 = sld [smem:[#allocation2 + $0x22]]
        %s207 = sld [smem:[#allocation2 + $0x23]]
        %s208 = sld [smem:[#allocation2 + $0x24]]
        %s209 = sld [smem:[#allocation2 + $0x25]]
        %s210 = sld [smem:[#allocation2 + $0x26]]
        %s211 = sld [smem:[#allocation2 + $0x27]]
        %s212 = sld [smem:[#allocation2 + $0x28]]
        %s213 = sld [smem:[#allocation2 + $0x29]]
        %s214 = sld [smem:[#allocation2 + $0x2a]]
        %s215 = sld [smem:[#allocation2 + $0x2b]]
        %s216 = sld [smem:[#allocation2 + $0x2c]]
        %s217 = sld [smem:[#allocation2 + $0x2d]]
        %s218 = sld [smem:[#allocation2 + $0x2e]]
        %s219 = sld [smem:[#allocation2 + $0x2f]]
        %s220 = sld [smem:[#allocation2 + $0x30]]
        %s221 = sld [smem:[#allocation2 + $0x31]]
        %s222 = sld [smem:[#allocation2 + $0x32]]
        %s223 = sld [smem:[#allocation2 + $0x33]]
        %s224 = sld [smem:[#allocation2 + $0x34]]
        %s225 = sld [smem:[#allocation2 + $0x35]]
        %s226 = sld [smem:[#allocation2 + $0x36]]
        %s227 = sld [smem:[#allocation2 + $0x37]]
        %s228 = sld [smem:[#allocation2 + $0x38]]
        %s229 = sld [smem:[#allocation2 + $0x39]]
        %s230 = sld [smem:[#allocation2 + $0x3a]]
        %s231 = sld [smem:[#allocation2 + $0x3b]]
        %s232 = sld [smem:[#allocation2 + $0x3c]]
        %s233 = sld [smem:[#allocation2 + $0x3d]]
        %s234 = sld [smem:[#allocation2 + $0x3e]]
        %s235 = sld [smem:[#allocation2 + $0x3f]]
        %s236 = sld [smem:[#allocation2 + $0x40]]
        %s237 = sld [smem:[#allocation2 + $0x41]]
        %s238 = sld [smem:[#allocation2 + $0x42]]
        %s239 = sld [smem:[#allocation2 + $0x43]]
        %s240 = sld [smem:[#allocation2 + $0x44]]
        %s241 = sld [smem:[#allocation2 + $0x45]]
        %s242 = sld [smem:[#allocation2 + $0x46]]
        %s243 = sld [smem:[#allocation2 + $0x47]]
        %s244 = sld [smem:[#allocation2 + $0x48]]
        %s245 = sld [smem:[#allocation2 + $0x49]]
        %s246 = sld [smem:[#allocation2 + $0x4a]]
        %s247 = sld [smem:[#allocation2 + $0x4b]]
        %s248 = sld [smem:[#allocation2 + $0x4c]]
        %s249 = sld [smem:[#allocation2 + $0x4d]]
        %s250 = sld [smem:[#allocation2 + $0x4e]]
        %s251 = sld [smem:[#allocation2 + $0x4f]]
        %s252 = sld [smem:[#allocation2 + $0x50]]
        %s253 = sld [smem:[#allocation2 + $0x51]]
        %s254 = sld [smem:[#allocation2 + $0x52]]
        %s255 = sld [smem:[#allocation2 + $0x53]]
        %s256 = sld [smem:[#allocation2 + $0x54]]
        %s257 = sld [smem:[#allocation2 + $0x55]]
        %s258 = sld [smem:[#allocation2 + $0x56]]
        %s259 = sld [smem:[#allocation2 + $0x57]]
        %s260 = sld [smem:[#allocation2 + $0x58]]
        %s261 = sld [smem:[#allocation2 + $0x59]]
        %s262 = sld [smem:[#allocation2 + $0x5a]]
        %s263 = sld [smem:[#allocation2 + $0x5b]]
        %s264 = sld [smem:[#allocation2 + $0x5c]]
        %s265 = sld [smem:[#allocation2 + $0x5d]]
        %s266 = sld [smem:[#allocation2 + $0x5e]]
        %s267 = sld [smem:[#allocation2 + $0x5f]]
        %s268 = sld [smem:[#allocation2 + $0x60]]
        %s269 = sld [smem:[#allocation2 + $0x61]]
        %s270 = sld [smem:[#allocation2 + $0x62]]
        %v271 = vlaneseq
        %v272 = vand.u32 %v271, 127
        %v273 = vadd.s32 %v272, 128
        %vm274 = vcmp.lt.s32.totalorder %v272, 0
        %v275 = vsub.s32 0, %v272
        %v276 = vsel %vm274, %v275, %v272
        %v277 = vshrl.u32 %v276, 4
        %v278 = vand.u32 %v276, 15
        %v279 = vsub.s32 0, %v278
        %v280 = vsel %vm274, %v279, %v278
        %vm281 = vcmp.lt.s32.totalorder %v273, 0
        %v282 = vsub.s32 0, %v273
        %v283 = vsel %vm281, %v282, %v273
        %v284 = vshrl.u32 %v283, 4
        %v285 = vand.u32 %v283, 15
        %v286 = vsub.s32 0, %v285
        %v287 = vsel %vm281, %v286, %v285
        %vm288 = vcmp.ne.s32.totalorder %v280, 0
        %vm289 = vcmp.ne.s32.totalorder %v287, 0
        %vm290 = vcmp.lt.s32.totalorder %v280, 0
        %vm291 = vcmp.lt.s32.totalorder %v287, 0
        %vm292 = vmand %vm290, %vm288
        %vm293 = vmand %vm291, %vm289
        %v294 = vadd.s32 %v280, 16
        %v295 = vadd.s32 %v287, 16
        %v296 = vsel %vm292, %v294, %v280
        %v297 = vsel %vm293, %v295, %v287
        %vm298 = vcmp.ge.s32.totalorder %v296, 3
        %vm299 = vcmp.ge.s32.totalorder %v297, 3
        %vm300 = vcmp.lt.s32.totalorder %v296, 19
        %vm301 = vcmp.lt.s32.totalorder %v297, 19
        %vm302 = vmand %vm298, %vm300
        %vm303 = vmand %vm299, %vm301
        %v304 = vsel %vm302, 1, 0
        %v305 = vsel %vm303, 1, 0
        %v306 = vcvt.s32.f32 %v304
        %v307 = vcvt.s32.f32 %v305
        %vm308 = vcmp.ge.s32.totalorder %v296, 2
        %vm309 = vcmp.ge.s32.totalorder %v297, 2
        %vm310 = vcmp.lt.s32.totalorder %v296, 18
        %vm311 = vcmp.lt.s32.totalorder %v297, 18
        %vm312 = vmand %vm308, %vm310
        %vm313 = vmand %vm309, %vm311
        %v314 = vsel %vm312, 1, 0
        %v315 = vsel %vm313, 1, 0
        %v316 = vcvt.s32.f32 %v314
        %v317 = vcvt.s32.f32 %v315
        %vm318 = vcmp.ge.s32.totalorder %v296, 1
        %vm319 = vcmp.ge.s32.totalorder %v297, 1
        %vm320 = vcmp.lt.s32.totalorder %v296, 17
        %vm321 = vcmp.lt.s32.totalorder %v297, 17
        %vm322 = vmand %vm318, %vm320
        %vm323 = vmand %vm319, %vm321
        %v324 = vsel %vm322, 1, 0
        %v325 = vsel %vm323, 1, 0
        %v326 = vcvt.s32.f32 %v324
        %v327 = vcvt.s32.f32 %v325
        %vm328 = vcmp.ge.s32.totalorder %v296, 0
        %vm329 = vcmp.ge.s32.totalorder %v297, 0
        %vm330 = vcmp.lt.s32.totalorder %v296, 16
        %vm331 = vcmp.lt.s32.totalorder %v297, 16
        %vm332 = vmand %vm328, %vm330
        %vm333 = vmand %vm329, %vm331
        %v334 = vsel %vm332, 1, 0
        %v335 = vsel %vm333, 1, 0
        %v336 = vcvt.s32.f32 %v334
        %v337 = vcvt.s32.f32 %v335
        %vm338 = vcmp.ge.s32.totalorder %v296, 4294967295
        %vm339 = vcmp.ge.s32.totalorder %v297, 4294967295
        %vm340 = vcmp.lt.s32.totalorder %v296, 15
        %vm341 = vcmp.lt.s32.totalorder %v297, 15
        %vm342 = vmand %vm338, %vm340
        %vm343 = vmand %vm339, %vm341
        %v344 = vsel %vm342, 1, 0
        %v345 = vsel %vm343, 1, 0
        %v346 = vcvt.s32.f32 %v344
        %v347 = vcvt.s32.f32 %v345
        %vm348 = vcmp.ge.s32.totalorder %v296, 4294967294
        %vm349 = vcmp.ge.s32.totalorder %v297, 4294967294
        %vm350 = vcmp.lt.s32.totalorder %v296, 14
        %vm351 = vcmp.lt.s32.totalorder %v297, 14
        %vm352 = vmand %vm348, %vm350
        %vm353 = vmand %vm349, %vm351
        %v354 = vsel %vm352, 1, 0
        %v355 = vsel %vm353, 1, 0
        %v356 = vcvt.s32.f32 %v354
        %v357 = vcvt.s32.f32 %v355
        %vm358 = vcmp.ge.s32.totalorder %v296, 4294967293
        %vm359 = vcmp.ge.s32.totalorder %v297, 4294967293
        %vm360 = vcmp.lt.s32.totalorder %v296, 13
        %vm361 = vcmp.lt.s32.totalorder %v297, 13
        %vm362 = vmand %vm358, %vm360
        %vm363 = vmand %vm359, %vm361
        %v364 = vsel %vm362, 1, 0
        %v365 = vsel %vm363, 1, 0
        %v366 = vcvt.s32.f32 %v364
        %v367 = vcvt.s32.f32 %v365
        %s368 = smul.u32 0, 2
        %s369 = smul.addr %s368, 4
        %s370 = scalar_lea.vmem %s150, %s369 [#allocation6]
        %v371 = vld [vmem:[%s370] sm:$0xff]
        %v373 = vcombine.high %v371, %v371
        %vm375 = vcmask 1043456
        %v376 = vsel %vm375, %v371, 0.0
        %v377 = vrot.slane %v376, 4
        %v378 = vadd.f32 %v376, %v377
        %v379 = vrot.slane %v378, 2
        %v380 = vadd.f32 %v378, %v379
        %v381 = vrot.slane %v380, 1
        %v382 = vadd.f32 %v380, %v381
        %v383 = vsel %vm375, %v373, 0.0
        %v384 = vrot.slane %v383, 4
        %v385 = vadd.f32 %v383, %v384
        %v386 = vrot.slane %v385, 2
        %v387 = vadd.f32 %v385, %v386
        %v388 = vrot.slane %v387, 1
        %v389 = vadd.f32 %v387, %v388
        %v390 = vadd.f32 %v382, 0.0
        %v391 = vadd.f32 %v389, 0.0
        %v392 = vsel %vm375, %v371, -inf
        %v393 = vrot.slane %v392, 4
        %v394 = vmax.f32 %v392, %v393
        %v395 = vrot.slane %v394, 2
        %v396 = vmax.f32 %v394, %v395
        %v397 = vrot.slane %v396, 1
        %v398 = vmax.f32 %v396, %v397
        %v399 = vsel %vm375, %v373, -inf
        %v400 = vrot.slane %v399, 4
        %v401 = vmax.f32 %v399, %v400
        %v402 = vrot.slane %v401, 2
        %v403 = vmax.f32 %v401, %v402
        %v404 = vrot.slane %v403, 1
        %v405 = vmax.f32 %v403, %v404
        %v406 = vmul.f32 %v390, 0.25
        %v407 = vmul.f32 %v391, 0.25
        %410 = vrot.lane.b32.xlu0 %v406, 51
        %v411 = vpop.permute.xlu0 %410
        %412 = vrot.lane.b32.xlu0 %v407, 51
        %v413 = vpop.permute.xlu0 %412
        %vm414 = vcmask 416768
        %v415 = vsel %vm414, %v411, %v413
        %v419 = vsel %vm414, 0.0, %v411
        %v420 = vsel %vm414, %v413, 0.0
        %423 = vrot.lane.b32.xlu0 %v398, 51
        %v424 = vpop.permute.xlu0 %423
        %425 = vrot.lane.b32.xlu0 %v405, 51
        %v426 = vpop.permute.xlu0 %425
        %v427 = vsel %vm414, %v424, %v426
        %v431 = vsel %vm414, 0.0, %v424
        %v432 = vsel %vm414, %v426, 0.0
        %v433 = vstv %s270
        %v434 = vstv %s172
        %v435 = vmul.f32 %v434, %v419
        %v436 = vmul.f32 %v434, %v415
        %v437 = vadd.f32 %v435, 0.0
        %v438 = vadd.f32 %v436, 0.0
        %v439 = vstv %s221
        %v440 = vmul.f32 %v439, %v431
        %v441 = vmul.f32 %v439, %v427
        %v442 = vadd.f32 %v437, %v440
        %v443 = vadd.f32 %v438, %v441
        %v444 = vstv %s179
        %v445 = vmul.f32 %v444, %v419
        %v446 = vmul.f32 %v444, %v415
        %v447 = vmul.f32 %v444, %v420
        %451 = vrot.lane.b32.xlu0 %v445, 112
        %v452 = vpop.permute.xlu0 %451
        %453 = vrot.lane.b32.xlu0 %v446, 112
        %v454 = vpop.permute.xlu0 %453
        %455 = vrot.lane.b32.xlu0 %v447, 112
        %v456 = vpop.permute.xlu0 %455
        %vm457 = vcmask 916480
        %v458 = vsel %vm457, %v452, %v454
        %v459 = vsel %vm457, %v454, %v456
        %v462 = vadd.f32 %v442, %v458
        %v463 = vadd.f32 %v443, %v459
        %v464 = vstv %s228
        %v465 = vmul.f32 %v464, %v431
        %v466 = vmul.f32 %v464, %v427
        %v467 = vmul.f32 %v464, %v432
        %471 = vrot.lane.b32.xlu0 %v465, 112
        %v472 = vpop.permute.xlu0 %471
        %473 = vrot.lane.b32.xlu0 %v466, 112
        %v474 = vpop.permute.xlu0 %473
        %475 = vrot.lane.b32.xlu0 %v467, 112
        %v476 = vpop.permute.xlu0 %475
        %v477 = vsel %vm457, %v472, %v474
        %v478 = vsel %vm457, %v474, %v476
        %v481 = vadd.f32 %v462, %v477
        %v482 = vadd.f32 %v463, %v478
        %v483 = vstv %s186
        %v484 = vmul.f32 %v483, %v419
        %v485 = vmul.f32 %v483, %v415
        %v486 = vmul.f32 %v483, %v420
        %490 = vrot.lane.b32.xlu0 %v484, 96
        %v491 = vpop.permute.xlu0 %490
        %492 = vrot.lane.b32.xlu0 %v485, 96
        %v493 = vpop.permute.xlu0 %492
        %494 = vrot.lane.b32.xlu0 %v486, 96
        %v495 = vpop.permute.xlu0 %494
        %vm496 = vcmask 785408
        %v497 = vsel %vm496, %v491, %v493
        %v498 = vsel %vm496, %v493, %v495
        %v501 = vadd.f32 %v481, %v497
        %v502 = vadd.f32 %v482, %v498
        %v503 = vstv %s235
        %v504 = vmul.f32 %v503, %v431
        %v505 = vmul.f32 %v503, %v427
        %v506 = vmul.f32 %v503, %v432
        %510 = vrot.lane.b32.xlu0 %v504, 96
        %v511 = vpop.permute.xlu0 %510
        %512 = vrot.lane.b32.xlu0 %v505, 96
        %v513 = vpop.permute.xlu0 %512
        %514 = vrot.lane.b32.xlu0 %v506, 96
        %v515 = vpop.permute.xlu0 %514
        %v516 = vsel %vm496, %v511, %v513
        %v517 = vsel %vm496, %v513, %v515
        %v520 = vadd.f32 %v501, %v516
        %v521 = vadd.f32 %v502, %v517
        %v522 = vstv %s193
        %v523 = vmul.f32 %v522, %v419
        %v524 = vmul.f32 %v522, %v415
        %v525 = vmul.f32 %v522, %v420
        %529 = vrot.lane.b32.xlu0 %v523, 80
        %v530 = vpop.permute.xlu0 %529
        %531 = vrot.lane.b32.xlu0 %v524, 80
        %v532 = vpop.permute.xlu0 %531
        %533 = vrot.lane.b32.xlu0 %v525, 80
        %v534 = vpop.permute.xlu0 %533
        %vm535 = vcmask 654336
        %v536 = vsel %vm535, %v530, %v532
        %v537 = vsel %vm535, %v532, %v534
        %v540 = vadd.f32 %v520, %v536
        %v541 = vadd.f32 %v521, %v537
        %v542 = vstv %s242
        %v543 = vmul.f32 %v542, %v431
        %v544 = vmul.f32 %v542, %v427
        %v545 = vmul.f32 %v542, %v432
        %549 = vrot.lane.b32.xlu0 %v543, 80
        %v550 = vpop.permute.xlu0 %549
        %551 = vrot.lane.b32.xlu0 %v544, 80
        %v552 = vpop.permute.xlu0 %551
        %553 = vrot.lane.b32.xlu0 %v545, 80
        %v554 = vpop.permute.xlu0 %553
        %v555 = vsel %vm535, %v550, %v552
        %v556 = vsel %vm535, %v552, %v554
        %v559 = vadd.f32 %v540, %v555
        %v560 = vadd.f32 %v541, %v556
        %v561 = vstv %s200
        %v562 = vmul.f32 %v561, %v419
        %v563 = vmul.f32 %v561, %v415
        %v564 = vmul.f32 %v561, %v420
        %568 = vrot.lane.b32.xlu0 %v562, 64
        %v569 = vpop.permute.xlu0 %568
        %570 = vrot.lane.b32.xlu0 %v563, 64
        %v571 = vpop.permute.xlu0 %570
        %572 = vrot.lane.b32.xlu0 %v564, 64
        %v573 = vpop.permute.xlu0 %572
        %vm574 = vcmask 523264
        %v575 = vsel %vm574, %v569, %v571
        %v576 = vsel %vm574, %v571, %v573
        %v579 = vadd.f32 %v559, %v575
        %v580 = vadd.f32 %v560, %v576
        %v581 = vstv %s249
        %v582 = vmul.f32 %v581, %v431
        %v583 = vmul.f32 %v581, %v427
        %v584 = vmul.f32 %v581, %v432
        %588 = vrot.lane.b32.xlu0 %v582, 64
        %v589 = vpop.permute.xlu0 %588
        %590 = vrot.lane.b32.xlu0 %v583, 64
        %v591 = vpop.permute.xlu0 %590
        %592 = vrot.lane.b32.xlu0 %v584, 64
        %v593 = vpop.permute.xlu0 %592
        %v594 = vsel %vm574, %v589, %v591
        %v595 = vsel %vm574, %v591, %v593
        %v598 = vadd.f32 %v579, %v594
        %v599 = vadd.f32 %v580, %v595
        %v600 = vstv %s207
        %v601 = vmul.f32 %v600, %v419
        %v602 = vmul.f32 %v600, %v415
        %v603 = vmul.f32 %v600, %v420
        %607 = vrot.lane.b32.xlu0 %v601, 48
        %v608 = vpop.permute.xlu0 %607
        %609 = vrot.lane.b32.xlu0 %v602, 48
        %v610 = vpop.permute.xlu0 %609
        %611 = vrot.lane.b32.xlu0 %v603, 48
        %v612 = vpop.permute.xlu0 %611
        %vm613 = vcmask 392192
        %v614 = vsel %vm613, %v608, %v610
        %v615 = vsel %vm613, %v610, %v612
        %v618 = vadd.f32 %v598, %v614
        %v619 = vadd.f32 %v599, %v615
        %v620 = vstv %s256
        %v621 = vmul.f32 %v620, %v431
        %v622 = vmul.f32 %v620, %v427
        %v623 = vmul.f32 %v620, %v432
        %627 = vrot.lane.b32.xlu0 %v621, 48
        %v628 = vpop.permute.xlu0 %627
        %629 = vrot.lane.b32.xlu0 %v622, 48
        %v630 = vpop.permute.xlu0 %629
        %631 = vrot.lane.b32.xlu0 %v623, 48
        %v632 = vpop.permute.xlu0 %631
        %v633 = vsel %vm613, %v628, %v630
        %v634 = vsel %vm613, %v630, %v632
        %v637 = vadd.f32 %v618, %v633
        %v638 = vadd.f32 %v619, %v634
        %v639 = vstv %s214
        %v640 = vmul.f32 %v639, %v419
        %v641 = vmul.f32 %v639, %v415
        %v642 = vmul.f32 %v639, %v420
        %646 = vrot.lane.b32.xlu0 %v640, 32
        %v647 = vpop.permute.xlu0 %646
        %648 = vrot.lane.b32.xlu0 %v641, 32
        %v649 = vpop.permute.xlu0 %648
        %650 = vrot.lane.b32.xlu0 %v642, 32
        %v651 = vpop.permute.xlu0 %650
        %vm652 = vcmask 261120
        %v653 = vsel %vm652, %v647, %v649
        %v654 = vsel %vm652, %v649, %v651
        %v657 = vadd.f32 %v637, %v653
        %v658 = vadd.f32 %v638, %v654
        %v659 = vstv %s263
        %v660 = vmul.f32 %v659, %v431
        %v661 = vmul.f32 %v659, %v427
        %v662 = vmul.f32 %v659, %v432
        %666 = vrot.lane.b32.xlu0 %v660, 32
        %v667 = vpop.permute.xlu0 %666
        %668 = vrot.lane.b32.xlu0 %v661, 32
        %v669 = vpop.permute.xlu0 %668
        %670 = vrot.lane.b32.xlu0 %v662, 32
        %v671 = vpop.permute.xlu0 %670
        %v672 = vsel %vm652, %v667, %v669
        %v673 = vsel %vm652, %v669, %v671
        %v676 = vadd.f32 %v657, %v672
        %v677 = vadd.f32 %v658, %v673
        %v678 = vmul.f32 %v676, %v306
        %v679 = vmul.f32 %v677, %v307
        %v680 = vadd.f32 %v433, %v678
        %v681 = vadd.f32 %v433, %v679
        %v682 = vstv %s173
        %v683 = vmul.f32 %v682, %v419
        %v684 = vmul.f32 %v682, %v415
        %v685 = vmul.f32 %v682, %v420
        %v686 = vadd.f32 %v683, 0.0
        %v687 = vadd.f32 %v684, 0.0
        %v688 = vadd.f32 %v685, 0.0
        %v689 = vstv %s222
        %v690 = vmul.f32 %v689, %v431
        %v691 = vmul.f32 %v689, %v427
        %v692 = vmul.f32 %v689, %v432
        %v693 = vadd.f32 %v686, %v690
        %v694 = vadd.f32 %v687, %v691
        %v695 = vadd.f32 %v688, %v692
        %v696 = vstv %s180
        %v697 = vmul.f32 %v696, %v419
        %v698 = vmul.f32 %v696, %v415
        %v699 = vmul.f32 %v696, %v420
        %703 = vrot.lane.b32.xlu0 %v697, 112
        %v704 = vpop.permute.xlu0 %703
        %705 = vrot.lane.b32.xlu0 %v698, 112
        %v706 = vpop.permute.xlu0 %705
        %707 = vrot.lane.b32.xlu0 %v699, 112
        %v708 = vpop.permute.xlu0 %707
        %v709 = vsel %vm457, %v704, %v706
        %v710 = vsel %vm457, %v706, %v708
        %v714 = vadd.f32 %v693, %v709
        %v715 = vadd.f32 %v694, %v710
        %v716 = vadd.f32 %v695, %v708
        %v717 = vstv %s229
        %v718 = vmul.f32 %v717, %v431
        %v719 = vmul.f32 %v717, %v427
        %v720 = vmul.f32 %v717, %v432
        %724 = vrot.lane.b32.xlu0 %v718, 112
        %v725 = vpop.permute.xlu0 %724
        %726 = vrot.lane.b32.xlu0 %v719, 112
        %v727 = vpop.permute.xlu0 %726
        %728 = vrot.lane.b32.xlu0 %v720, 112
        %v729 = vpop.permute.xlu0 %728
        %v730 = vsel %vm457, %v725, %v727
        %v731 = vsel %vm457, %v727, %v729
        %v735 = vadd.f32 %v714, %v730
        %v736 = vadd.f32 %v715, %v731
        %v737 = vadd.f32 %v716, %v729
        %v738 = vstv %s187
        %v739 = vmul.f32 %v738, %v419
        %v740 = vmul.f32 %v738, %v415
        %v741 = vmul.f32 %v738, %v420
        %745 = vrot.lane.b32.xlu0 %v739, 96
        %v746 = vpop.permute.xlu0 %745
        %747 = vrot.lane.b32.xlu0 %v740, 96
        %v748 = vpop.permute.xlu0 %747
        %749 = vrot.lane.b32.xlu0 %v741, 96
        %v750 = vpop.permute.xlu0 %749
        %v751 = vsel %vm496, %v746, %v748
        %v752 = vsel %vm496, %v748, %v750
        %v756 = vadd.f32 %v735, %v751
        %v757 = vadd.f32 %v736, %v752
        %v758 = vadd.f32 %v737, %v750
        %v759 = vstv %s236
        %v760 = vmul.f32 %v759, %v431
        %v761 = vmul.f32 %v759, %v427
        %v762 = vmul.f32 %v759, %v432
        %766 = vrot.lane.b32.xlu0 %v760, 96
        %v767 = vpop.permute.xlu0 %766
        %768 = vrot.lane.b32.xlu0 %v761, 96
        %v769 = vpop.permute.xlu0 %768
        %770 = vrot.lane.b32.xlu0 %v762, 96
        %v771 = vpop.permute.xlu0 %770
        %v772 = vsel %vm496, %v767, %v769
        %v773 = vsel %vm496, %v769, %v771
        %v777 = vadd.f32 %v756, %v772
        %v778 = vadd.f32 %v757, %v773
        %v779 = vadd.f32 %v758, %v771
        %v780 = vstv %s194
        %v781 = vmul.f32 %v780, %v419
        %v782 = vmul.f32 %v780, %v415
        %v783 = vmul.f32 %v780, %v420
        %787 = vrot.lane.b32.xlu0 %v781, 80
        %v788 = vpop.permute.xlu0 %787
        %789 = vrot.lane.b32.xlu0 %v782, 80
        %v790 = vpop.permute.xlu0 %789
        %791 = vrot.lane.b32.xlu0 %v783, 80
        %v792 = vpop.permute.xlu0 %791
        %v793 = vsel %vm535, %v788, %v790
        %v794 = vsel %vm535, %v790, %v792
        %v798 = vadd.f32 %v777, %v793
        %v799 = vadd.f32 %v778, %v794
        %v800 = vadd.f32 %v779, %v792
        %v801 = vstv %s243
        %v802 = vmul.f32 %v801, %v431
        %v803 = vmul.f32 %v801, %v427
        %v804 = vmul.f32 %v801, %v432
        %808 = vrot.lane.b32.xlu0 %v802, 80
        %v809 = vpop.permute.xlu0 %808
        %810 = vrot.lane.b32.xlu0 %v803, 80
        %v811 = vpop.permute.xlu0 %810
        %812 = vrot.lane.b32.xlu0 %v804, 80
        %v813 = vpop.permute.xlu0 %812
        %v814 = vsel %vm535, %v809, %v811
        %v815 = vsel %vm535, %v811, %v813
        %v819 = vadd.f32 %v798, %v814
        %v820 = vadd.f32 %v799, %v815
        %v821 = vadd.f32 %v800, %v813
        %v822 = vstv %s201
        %v823 = vmul.f32 %v822, %v419
        %v824 = vmul.f32 %v822, %v415
        %v825 = vmul.f32 %v822, %v420
        %829 = vrot.lane.b32.xlu0 %v823, 64
        %v830 = vpop.permute.xlu0 %829
        %831 = vrot.lane.b32.xlu0 %v824, 64
        %v832 = vpop.permute.xlu0 %831
        %833 = vrot.lane.b32.xlu0 %v825, 64
        %v834 = vpop.permute.xlu0 %833
        %v835 = vsel %vm574, %v830, %v832
        %v836 = vsel %vm574, %v832, %v834
        %v840 = vadd.f32 %v819, %v835
        %v841 = vadd.f32 %v820, %v836
        %v842 = vadd.f32 %v821, %v834
        %v843 = vstv %s250
        %v844 = vmul.f32 %v843, %v431
        %v845 = vmul.f32 %v843, %v427
        %v846 = vmul.f32 %v843, %v432
        %850 = vrot.lane.b32.xlu0 %v844, 64
        %v851 = vpop.permute.xlu0 %850
        %852 = vrot.lane.b32.xlu0 %v845, 64
        %v853 = vpop.permute.xlu0 %852
        %854 = vrot.lane.b32.xlu0 %v846, 64
        %v855 = vpop.permute.xlu0 %854
        %v856 = vsel %vm574, %v851, %v853
        %v857 = vsel %vm574, %v853, %v855
        %v861 = vadd.f32 %v840, %v856
        %v862 = vadd.f32 %v841, %v857
        %v863 = vadd.f32 %v842, %v855
        %v864 = vstv %s208
        %v865 = vmul.f32 %v864, %v419
        %v866 = vmul.f32 %v864, %v415
        %v867 = vmul.f32 %v864, %v420
        %871 = vrot.lane.b32.xlu0 %v865, 48
        %v872 = vpop.permute.xlu0 %871
        %873 = vrot.lane.b32.xlu0 %v866, 48
        %v874 = vpop.permute.xlu0 %873
        %875 = vrot.lane.b32.xlu0 %v867, 48
        %v876 = vpop.permute.xlu0 %875
        %v877 = vsel %vm613, %v872, %v874
        %v878 = vsel %vm613, %v874, %v876
        %v882 = vadd.f32 %v861, %v877
        %v883 = vadd.f32 %v862, %v878
        %v884 = vadd.f32 %v863, %v876
        %v885 = vstv %s257
        %v886 = vmul.f32 %v885, %v431
        %v887 = vmul.f32 %v885, %v427
        %v888 = vmul.f32 %v885, %v432
        %892 = vrot.lane.b32.xlu0 %v886, 48
        %v893 = vpop.permute.xlu0 %892
        %894 = vrot.lane.b32.xlu0 %v887, 48
        %v895 = vpop.permute.xlu0 %894
        %896 = vrot.lane.b32.xlu0 %v888, 48
        %v897 = vpop.permute.xlu0 %896
        %v898 = vsel %vm613, %v893, %v895
        %v899 = vsel %vm613, %v895, %v897
        %v903 = vadd.f32 %v882, %v898
        %v904 = vadd.f32 %v883, %v899
        %v905 = vadd.f32 %v884, %v897
        %v906 = vstv %s215
        %v907 = vmul.f32 %v906, %v419
        %v908 = vmul.f32 %v906, %v415
        %v909 = vmul.f32 %v906, %v420
        %913 = vrot.lane.b32.xlu0 %v907, 32
        %v914 = vpop.permute.xlu0 %913
        %915 = vrot.lane.b32.xlu0 %v908, 32
        %v916 = vpop.permute.xlu0 %915
        %917 = vrot.lane.b32.xlu0 %v909, 32
        %v918 = vpop.permute.xlu0 %917
        %v919 = vsel %vm652, %v914, %v916
        %v920 = vsel %vm652, %v916, %v918
        %v924 = vadd.f32 %v903, %v919
        %v925 = vadd.f32 %v904, %v920
        %v926 = vadd.f32 %v905, %v918
        %v927 = vstv %s264
        %v928 = vmul.f32 %v927, %v431
        %v929 = vmul.f32 %v927, %v427
        %v930 = vmul.f32 %v927, %v432
        %934 = vrot.lane.b32.xlu0 %v928, 32
        %v935 = vpop.permute.xlu0 %934
        %936 = vrot.lane.b32.xlu0 %v929, 32
        %v937 = vpop.permute.xlu0 %936
        %938 = vrot.lane.b32.xlu0 %v930, 32
        %v939 = vpop.permute.xlu0 %938
        %v940 = vsel %vm652, %v935, %v937
        %v941 = vsel %vm652, %v937, %v939
        %v945 = vadd.f32 %v924, %v940
        %v946 = vadd.f32 %v925, %v941
        %v947 = vadd.f32 %v926, %v939
        %950 = vrot.lane.b32.xlu0 %v316, 1
        %v951 = vpop.permute.xlu0 %950
        %952 = vrot.lane.b32.xlu0 %v317, 1
        %v953 = vpop.permute.xlu0 %952
        %vm954 = vcmask 7168
        %v955 = vsel %vm954, %v951, %v953
        %v959 = vmul.f32 %v945, %v951
        %v960 = vmul.f32 %v946, %v955
        %v961 = vmul.f32 %v947, %v953
        %965 = vrot.lane.b32.xlu0 %v959, 127
        %v966 = vpop.permute.xlu0 %965
        %967 = vrot.lane.b32.xlu0 %v960, 127
        %v968 = vpop.permute.xlu0 %967
        %969 = vrot.lane.b32.xlu0 %v961, 127
        %v970 = vpop.permute.xlu0 %969
        %vm971 = vcmask 1039360
        %v972 = vsel %vm971, %v966, %v968
        %v973 = vsel %vm971, %v968, %v970
        %v976 = vadd.f32 %v680, %v972
        %v977 = vadd.f32 %v681, %v973
        %v978 = vstv %s174
        %v979 = vmul.f32 %v978, %v419
        %v980 = vmul.f32 %v978, %v415
        %v981 = vmul.f32 %v978, %v420
        %v982 = vadd.f32 %v979, 0.0
        %v983 = vadd.f32 %v980, 0.0
        %v984 = vadd.f32 %v981, 0.0
        %v985 = vstv %s223
        %v986 = vmul.f32 %v985, %v431
        %v987 = vmul.f32 %v985, %v427
        %v988 = vmul.f32 %v985, %v432
        %v989 = vadd.f32 %v982, %v986
        %v990 = vadd.f32 %v983, %v987
        %v991 = vadd.f32 %v984, %v988
        %v992 = vstv %s181
        %v993 = vmul.f32 %v992, %v419
        %v994 = vmul.f32 %v992, %v415
        %v995 = vmul.f32 %v992, %v420
        %999 = vrot.lane.b32.xlu0 %v993, 112
        %v1000 = vpop.permute.xlu0 %999
        %1001 = vrot.lane.b32.xlu0 %v994, 112
        %v1002 = vpop.permute.xlu0 %1001
        %1003 = vrot.lane.b32.xlu0 %v995, 112
        %v1004 = vpop.permute.xlu0 %1003
        %v1005 = vsel %vm457, %v1000, %v1002
        %v1006 = vsel %vm457, %v1002, %v1004
        %v1010 = vadd.f32 %v989, %v1005
        %v1011 = vadd.f32 %v990, %v1006
        %v1012 = vadd.f32 %v991, %v1004
        %v1013 = vstv %s230
        %v1014 = vmul.f32 %v1013, %v431
        %v1015 = vmul.f32 %v1013, %v427
        %v1016 = vmul.f32 %v1013, %v432
        %1020 = vrot.lane.b32.xlu0 %v1014, 112
        %v1021 = vpop.permute.xlu0 %1020
        %1022 = vrot.lane.b32.xlu0 %v1015, 112
        %v1023 = vpop.permute.xlu0 %1022
        %1024 = vrot.lane.b32.xlu0 %v1016, 112
        %v1025 = vpop.permute.xlu0 %1024
        %v1026 = vsel %vm457, %v1021, %v1023
        %v1027 = vsel %vm457, %v1023, %v1025
        %v1031 = vadd.f32 %v1010, %v1026
        %v1032 = vadd.f32 %v1011, %v1027
        %v1033 = vadd.f32 %v1012, %v1025
        %v1034 = vstv %s188
        %v1035 = vmul.f32 %v1034, %v419
        %v1036 = vmul.f32 %v1034, %v415
        %v1037 = vmul.f32 %v1034, %v420
        %1041 = vrot.lane.b32.xlu0 %v1035, 96
        %v1042 = vpop.permute.xlu0 %1041
        %1043 = vrot.lane.b32.xlu0 %v1036, 96
        %v1044 = vpop.permute.xlu0 %1043
        %1045 = vrot.lane.b32.xlu0 %v1037, 96
        %v1046 = vpop.permute.xlu0 %1045
        %v1047 = vsel %vm496, %v1042, %v1044
        %v1048 = vsel %vm496, %v1044, %v1046
        %v1052 = vadd.f32 %v1031, %v1047
        %v1053 = vadd.f32 %v1032, %v1048
        %v1054 = vadd.f32 %v1033, %v1046
        %v1055 = vstv %s237
        %v1056 = vmul.f32 %v1055, %v431
        %v1057 = vmul.f32 %v1055, %v427
        %v1058 = vmul.f32 %v1055, %v432
        %1062 = vrot.lane.b32.xlu0 %v1056, 96
        %v1063 = vpop.permute.xlu0 %1062
        %1064 = vrot.lane.b32.xlu0 %v1057, 96
        %v1065 = vpop.permute.xlu0 %1064
        %1066 = vrot.lane.b32.xlu0 %v1058, 96
        %v1067 = vpop.permute.xlu0 %1066
        %v1068 = vsel %vm496, %v1063, %v1065
        %v1069 = vsel %vm496, %v1065, %v1067
        %v1073 = vadd.f32 %v1052, %v1068
        %v1074 = vadd.f32 %v1053, %v1069
        %v1075 = vadd.f32 %v1054, %v1067
        %v1076 = vstv %s195
        %v1077 = vmul.f32 %v1076, %v419
        %v1078 = vmul.f32 %v1076, %v415
        %v1079 = vmul.f32 %v1076, %v420
        %1083 = vrot.lane.b32.xlu0 %v1077, 80
        %v1084 = vpop.permute.xlu0 %1083
        %1085 = vrot.lane.b32.xlu0 %v1078, 80
        %v1086 = vpop.permute.xlu0 %1085
        %1087 = vrot.lane.b32.xlu0 %v1079, 80
        %v1088 = vpop.permute.xlu0 %1087
        %v1089 = vsel %vm535, %v1084, %v1086
        %v1090 = vsel %vm535, %v1086, %v1088
        %v1094 = vadd.f32 %v1073, %v1089
        %v1095 = vadd.f32 %v1074, %v1090
        %v1096 = vadd.f32 %v1075, %v1088
        %v1097 = vstv %s244
        %v1098 = vmul.f32 %v1097, %v431
        %v1099 = vmul.f32 %v1097, %v427
        %v1100 = vmul.f32 %v1097, %v432
        %1104 = vrot.lane.b32.xlu0 %v1098, 80
        %v1105 = vpop.permute.xlu0 %1104
        %1106 = vrot.lane.b32.xlu0 %v1099, 80
        %v1107 = vpop.permute.xlu0 %1106
        %1108 = vrot.lane.b32.xlu0 %v1100, 80
        %v1109 = vpop.permute.xlu0 %1108
        %v1110 = vsel %vm535, %v1105, %v1107
        %v1111 = vsel %vm535, %v1107, %v1109
        %v1115 = vadd.f32 %v1094, %v1110
        %v1116 = vadd.f32 %v1095, %v1111
        %v1117 = vadd.f32 %v1096, %v1109
        %v1118 = vstv %s202
        %v1119 = vmul.f32 %v1118, %v419
        %v1120 = vmul.f32 %v1118, %v415
        %v1121 = vmul.f32 %v1118, %v420
        %1125 = vrot.lane.b32.xlu0 %v1119, 64
        %v1126 = vpop.permute.xlu0 %1125
        %1127 = vrot.lane.b32.xlu0 %v1120, 64
        %v1128 = vpop.permute.xlu0 %1127
        %1129 = vrot.lane.b32.xlu0 %v1121, 64
        %v1130 = vpop.permute.xlu0 %1129
        %v1131 = vsel %vm574, %v1126, %v1128
        %v1132 = vsel %vm574, %v1128, %v1130
        %v1136 = vadd.f32 %v1115, %v1131
        %v1137 = vadd.f32 %v1116, %v1132
        %v1138 = vadd.f32 %v1117, %v1130
        %v1139 = vstv %s251
        %v1140 = vmul.f32 %v1139, %v431
        %v1141 = vmul.f32 %v1139, %v427
        %v1142 = vmul.f32 %v1139, %v432
        %1146 = vrot.lane.b32.xlu0 %v1140, 64
        %v1147 = vpop.permute.xlu0 %1146
        %1148 = vrot.lane.b32.xlu0 %v1141, 64
        %v1149 = vpop.permute.xlu0 %1148
        %1150 = vrot.lane.b32.xlu0 %v1142, 64
        %v1151 = vpop.permute.xlu0 %1150
        %v1152 = vsel %vm574, %v1147, %v1149
        %v1153 = vsel %vm574, %v1149, %v1151
        %v1157 = vadd.f32 %v1136, %v1152
        %v1158 = vadd.f32 %v1137, %v1153
        %v1159 = vadd.f32 %v1138, %v1151
        %v1160 = vstv %s209
        %v1161 = vmul.f32 %v1160, %v419
        %v1162 = vmul.f32 %v1160, %v415
        %v1163 = vmul.f32 %v1160, %v420
        %1167 = vrot.lane.b32.xlu0 %v1161, 48
        %v1168 = vpop.permute.xlu0 %1167
        %1169 = vrot.lane.b32.xlu0 %v1162, 48
        %v1170 = vpop.permute.xlu0 %1169
        %1171 = vrot.lane.b32.xlu0 %v1163, 48
        %v1172 = vpop.permute.xlu0 %1171
        %v1173 = vsel %vm613, %v1168, %v1170
        %v1174 = vsel %vm613, %v1170, %v1172
        %v1178 = vadd.f32 %v1157, %v1173
        %v1179 = vadd.f32 %v1158, %v1174
        %v1180 = vadd.f32 %v1159, %v1172
        %v1181 = vstv %s258
        %v1182 = vmul.f32 %v1181, %v431
        %v1183 = vmul.f32 %v1181, %v427
        %v1184 = vmul.f32 %v1181, %v432
        %1188 = vrot.lane.b32.xlu0 %v1182, 48
        %v1189 = vpop.permute.xlu0 %1188
        %1190 = vrot.lane.b32.xlu0 %v1183, 48
        %v1191 = vpop.permute.xlu0 %1190
        %1192 = vrot.lane.b32.xlu0 %v1184, 48
        %v1193 = vpop.permute.xlu0 %1192
        %v1194 = vsel %vm613, %v1189, %v1191
        %v1195 = vsel %vm613, %v1191, %v1193
        %v1199 = vadd.f32 %v1178, %v1194
        %v1200 = vadd.f32 %v1179, %v1195
        %v1201 = vadd.f32 %v1180, %v1193
        %v1202 = vstv %s216
        %v1203 = vmul.f32 %v1202, %v419
        %v1204 = vmul.f32 %v1202, %v415
        %v1205 = vmul.f32 %v1202, %v420
        %1209 = vrot.lane.b32.xlu0 %v1203, 32
        %v1210 = vpop.permute.xlu0 %1209
        %1211 = vrot.lane.b32.xlu0 %v1204, 32
        %v1212 = vpop.permute.xlu0 %1211
        %1213 = vrot.lane.b32.xlu0 %v1205, 32
        %v1214 = vpop.permute.xlu0 %1213
        %v1215 = vsel %vm652, %v1210, %v1212
        %v1216 = vsel %vm652, %v1212, %v1214
        %v1220 = vadd.f32 %v1199, %v1215
        %v1221 = vadd.f32 %v1200, %v1216
        %v1222 = vadd.f32 %v1201, %v1214
        %v1223 = vstv %s265
        %v1224 = vmul.f32 %v1223, %v431
        %v1225 = vmul.f32 %v1223, %v427
        %v1226 = vmul.f32 %v1223, %v432
        %1230 = vrot.lane.b32.xlu0 %v1224, 32
        %v1231 = vpop.permute.xlu0 %1230
        %1232 = vrot.lane.b32.xlu0 %v1225, 32
        %v1233 = vpop.permute.xlu0 %1232
        %1234 = vrot.lane.b32.xlu0 %v1226, 32
        %v1235 = vpop.permute.xlu0 %1234
        %v1236 = vsel %vm652, %v1231, %v1233
        %v1237 = vsel %vm652, %v1233, %v1235
        %v1241 = vadd.f32 %v1220, %v1236
        %v1242 = vadd.f32 %v1221, %v1237
        %v1243 = vadd.f32 %v1222, %v1235
        %1246 = vrot.lane.b32.xlu0 %v326, 2
        %v1247 = vpop.permute.xlu0 %1246
        %1248 = vrot.lane.b32.xlu0 %v327, 2
        %v1249 = vpop.permute.xlu0 %1248
        %vm1250 = vcmask 15360
        %v1251 = vsel %vm1250, %v1247, %v1249
        %v1255 = vmul.f32 %v1241, %v1247
        %v1256 = vmul.f32 %v1242, %v1251
        %v1257 = vmul.f32 %v1243, %v1249
        %1261 = vrot.lane.b32.xlu0 %v1255, 126
        %v1262 = vpop.permute.xlu0 %1261
        %1263 = vrot.lane.b32.xlu0 %v1256, 126
        %v1264 = vpop.permute.xlu0 %1263
        %1265 = vrot.lane.b32.xlu0 %v1257, 126
        %v1266 = vpop.permute.xlu0 %1265
        %vm1267 = vcmask 1031168
        %v1268 = vsel %vm1267, %v1262, %v1264
        %v1269 = vsel %vm1267, %v1264, %v1266
        %v1272 = vadd.f32 %v976, %v1268
        %v1273 = vadd.f32 %v977, %v1269
        %v1274 = vstv %s175
        %v1275 = vmul.f32 %v1274, %v419
        %v1276 = vmul.f32 %v1274, %v415
        %v1277 = vmul.f32 %v1274, %v420
        %v1278 = vadd.f32 %v1275, 0.0
        %v1279 = vadd.f32 %v1276, 0.0
        %v1280 = vadd.f32 %v1277, 0.0
        %v1281 = vstv %s224
        %v1282 = vmul.f32 %v1281, %v431
        %v1283 = vmul.f32 %v1281, %v427
        %v1284 = vmul.f32 %v1281, %v432
        %v1285 = vadd.f32 %v1278, %v1282
        %v1286 = vadd.f32 %v1279, %v1283
        %v1287 = vadd.f32 %v1280, %v1284
        %v1288 = vstv %s182
        %v1289 = vmul.f32 %v1288, %v419
        %v1290 = vmul.f32 %v1288, %v415
        %v1291 = vmul.f32 %v1288, %v420
        %1295 = vrot.lane.b32.xlu0 %v1289, 112
        %v1296 = vpop.permute.xlu0 %1295
        %1297 = vrot.lane.b32.xlu0 %v1290, 112
        %v1298 = vpop.permute.xlu0 %1297
        %1299 = vrot.lane.b32.xlu0 %v1291, 112
        %v1300 = vpop.permute.xlu0 %1299
        %v1301 = vsel %vm457, %v1296, %v1298
        %v1302 = vsel %vm457, %v1298, %v1300
        %v1306 = vadd.f32 %v1285, %v1301
        %v1307 = vadd.f32 %v1286, %v1302
        %v1308 = vadd.f32 %v1287, %v1300
        %v1309 = vstv %s231
        %v1310 = vmul.f32 %v1309, %v431
        %v1311 = vmul.f32 %v1309, %v427
        %v1312 = vmul.f32 %v1309, %v432
        %1316 = vrot.lane.b32.xlu0 %v1310, 112
        %v1317 = vpop.permute.xlu0 %1316
        %1318 = vrot.lane.b32.xlu0 %v1311, 112
        %v1319 = vpop.permute.xlu0 %1318
        %1320 = vrot.lane.b32.xlu0 %v1312, 112
        %v1321 = vpop.permute.xlu0 %1320
        %v1322 = vsel %vm457, %v1317, %v1319
        %v1323 = vsel %vm457, %v1319, %v1321
        %v1327 = vadd.f32 %v1306, %v1322
        %v1328 = vadd.f32 %v1307, %v1323
        %v1329 = vadd.f32 %v1308, %v1321
        %v1330 = vstv %s189
        %v1331 = vmul.f32 %v1330, %v419
        %v1332 = vmul.f32 %v1330, %v415
        %v1333 = vmul.f32 %v1330, %v420
        %1337 = vrot.lane.b32.xlu0 %v1331, 96
        %v1338 = vpop.permute.xlu0 %1337
        %1339 = vrot.lane.b32.xlu0 %v1332, 96
        %v1340 = vpop.permute.xlu0 %1339
        %1341 = vrot.lane.b32.xlu0 %v1333, 96
        %v1342 = vpop.permute.xlu0 %1341
        %v1343 = vsel %vm496, %v1338, %v1340
        %v1344 = vsel %vm496, %v1340, %v1342
        %v1348 = vadd.f32 %v1327, %v1343
        %v1349 = vadd.f32 %v1328, %v1344
        %v1350 = vadd.f32 %v1329, %v1342
        %v1351 = vstv %s238
        %v1352 = vmul.f32 %v1351, %v431
        %v1353 = vmul.f32 %v1351, %v427
        %v1354 = vmul.f32 %v1351, %v432
        %1358 = vrot.lane.b32.xlu0 %v1352, 96
        %v1359 = vpop.permute.xlu0 %1358
        %1360 = vrot.lane.b32.xlu0 %v1353, 96
        %v1361 = vpop.permute.xlu0 %1360
        %1362 = vrot.lane.b32.xlu0 %v1354, 96
        %v1363 = vpop.permute.xlu0 %1362
        %v1364 = vsel %vm496, %v1359, %v1361
        %v1365 = vsel %vm496, %v1361, %v1363
        %v1369 = vadd.f32 %v1348, %v1364
        %v1370 = vadd.f32 %v1349, %v1365
        %v1371 = vadd.f32 %v1350, %v1363
        %v1372 = vstv %s196
        %v1373 = vmul.f32 %v1372, %v419
        %v1374 = vmul.f32 %v1372, %v415
        %v1375 = vmul.f32 %v1372, %v420
        %1379 = vrot.lane.b32.xlu0 %v1373, 80
        %v1380 = vpop.permute.xlu0 %1379
        %1381 = vrot.lane.b32.xlu0 %v1374, 80
        %v1382 = vpop.permute.xlu0 %1381
        %1383 = vrot.lane.b32.xlu0 %v1375, 80
        %v1384 = vpop.permute.xlu0 %1383
        %v1385 = vsel %vm535, %v1380, %v1382
        %v1386 = vsel %vm535, %v1382, %v1384
        %v1390 = vadd.f32 %v1369, %v1385
        %v1391 = vadd.f32 %v1370, %v1386
        %v1392 = vadd.f32 %v1371, %v1384
        %v1393 = vstv %s245
        %v1394 = vmul.f32 %v1393, %v431
        %v1395 = vmul.f32 %v1393, %v427
        %v1396 = vmul.f32 %v1393, %v432
        %1400 = vrot.lane.b32.xlu0 %v1394, 80
        %v1401 = vpop.permute.xlu0 %1400
        %1402 = vrot.lane.b32.xlu0 %v1395, 80
        %v1403 = vpop.permute.xlu0 %1402
        %1404 = vrot.lane.b32.xlu0 %v1396, 80
        %v1405 = vpop.permute.xlu0 %1404
        %v1406 = vsel %vm535, %v1401, %v1403
        %v1407 = vsel %vm535, %v1403, %v1405
        %v1411 = vadd.f32 %v1390, %v1406
        %v1412 = vadd.f32 %v1391, %v1407
        %v1413 = vadd.f32 %v1392, %v1405
        %v1414 = vstv %s203
        %v1415 = vmul.f32 %v1414, %v419
        %v1416 = vmul.f32 %v1414, %v415
        %v1417 = vmul.f32 %v1414, %v420
        %1421 = vrot.lane.b32.xlu0 %v1415, 64
        %v1422 = vpop.permute.xlu0 %1421
        %1423 = vrot.lane.b32.xlu0 %v1416, 64
        %v1424 = vpop.permute.xlu0 %1423
        %1425 = vrot.lane.b32.xlu0 %v1417, 64
        %v1426 = vpop.permute.xlu0 %1425
        %v1427 = vsel %vm574, %v1422, %v1424
        %v1428 = vsel %vm574, %v1424, %v1426
        %v1432 = vadd.f32 %v1411, %v1427
        %v1433 = vadd.f32 %v1412, %v1428
        %v1434 = vadd.f32 %v1413, %v1426
        %v1435 = vstv %s252
        %v1436 = vmul.f32 %v1435, %v431
        %v1437 = vmul.f32 %v1435, %v427
        %v1438 = vmul.f32 %v1435, %v432
        %1442 = vrot.lane.b32.xlu0 %v1436, 64
        %v1443 = vpop.permute.xlu0 %1442
        %1444 = vrot.lane.b32.xlu0 %v1437, 64
        %v1445 = vpop.permute.xlu0 %1444
        %1446 = vrot.lane.b32.xlu0 %v1438, 64
        %v1447 = vpop.permute.xlu0 %1446
        %v1448 = vsel %vm574, %v1443, %v1445
        %v1449 = vsel %vm574, %v1445, %v1447
        %v1453 = vadd.f32 %v1432, %v1448
        %v1454 = vadd.f32 %v1433, %v1449
        %v1455 = vadd.f32 %v1434, %v1447
        %v1456 = vstv %s210
        %v1457 = vmul.f32 %v1456, %v419
        %v1458 = vmul.f32 %v1456, %v415
        %v1459 = vmul.f32 %v1456, %v420
        %1463 = vrot.lane.b32.xlu0 %v1457, 48
        %v1464 = vpop.permute.xlu0 %1463
        %1465 = vrot.lane.b32.xlu0 %v1458, 48
        %v1466 = vpop.permute.xlu0 %1465
        %1467 = vrot.lane.b32.xlu0 %v1459, 48
        %v1468 = vpop.permute.xlu0 %1467
        %v1469 = vsel %vm613, %v1464, %v1466
        %v1470 = vsel %vm613, %v1466, %v1468
        %v1474 = vadd.f32 %v1453, %v1469
        %v1475 = vadd.f32 %v1454, %v1470
        %v1476 = vadd.f32 %v1455, %v1468
        %v1477 = vstv %s259
        %v1478 = vmul.f32 %v1477, %v431
        %v1479 = vmul.f32 %v1477, %v427
        %v1480 = vmul.f32 %v1477, %v432
        %1484 = vrot.lane.b32.xlu0 %v1478, 48
        %v1485 = vpop.permute.xlu0 %1484
        %1486 = vrot.lane.b32.xlu0 %v1479, 48
        %v1487 = vpop.permute.xlu0 %1486
        %1488 = vrot.lane.b32.xlu0 %v1480, 48
        %v1489 = vpop.permute.xlu0 %1488
        %v1490 = vsel %vm613, %v1485, %v1487
        %v1491 = vsel %vm613, %v1487, %v1489
        %v1495 = vadd.f32 %v1474, %v1490
        %v1496 = vadd.f32 %v1475, %v1491
        %v1497 = vadd.f32 %v1476, %v1489
        %v1498 = vstv %s217
        %v1499 = vmul.f32 %v1498, %v419
        %v1500 = vmul.f32 %v1498, %v415
        %v1501 = vmul.f32 %v1498, %v420
        %1505 = vrot.lane.b32.xlu0 %v1499, 32
        %v1506 = vpop.permute.xlu0 %1505
        %1507 = vrot.lane.b32.xlu0 %v1500, 32
        %v1508 = vpop.permute.xlu0 %1507
        %1509 = vrot.lane.b32.xlu0 %v1501, 32
        %v1510 = vpop.permute.xlu0 %1509
        %v1511 = vsel %vm652, %v1506, %v1508
        %v1512 = vsel %vm652, %v1508, %v1510
        %v1516 = vadd.f32 %v1495, %v1511
        %v1517 = vadd.f32 %v1496, %v1512
        %v1518 = vadd.f32 %v1497, %v1510
        %v1519 = vstv %s266
        %v1520 = vmul.f32 %v1519, %v431
        %v1521 = vmul.f32 %v1519, %v427
        %v1522 = vmul.f32 %v1519, %v432
        %1526 = vrot.lane.b32.xlu0 %v1520, 32
        %v1527 = vpop.permute.xlu0 %1526
        %1528 = vrot.lane.b32.xlu0 %v1521, 32
        %v1529 = vpop.permute.xlu0 %1528
        %1530 = vrot.lane.b32.xlu0 %v1522, 32
        %v1531 = vpop.permute.xlu0 %1530
        %v1532 = vsel %vm652, %v1527, %v1529
        %v1533 = vsel %vm652, %v1529, %v1531
        %v1537 = vadd.f32 %v1516, %v1532
        %v1538 = vadd.f32 %v1517, %v1533
        %v1539 = vadd.f32 %v1518, %v1531
        %1542 = vrot.lane.b32.xlu0 %v336, 3
        %v1543 = vpop.permute.xlu0 %1542
        %1544 = vrot.lane.b32.xlu0 %v337, 3
        %v1545 = vpop.permute.xlu0 %1544
        %vm1546 = vcmask 23552
        %v1547 = vsel %vm1546, %v1543, %v1545
        %v1551 = vmul.f32 %v1537, %v1543
        %v1552 = vmul.f32 %v1538, %v1547
        %v1553 = vmul.f32 %v1539, %v1545
        %1557 = vrot.lane.b32.xlu0 %v1551, 125
        %v1558 = vpop.permute.xlu0 %1557
        %1559 = vrot.lane.b32.xlu0 %v1552, 125
        %v1560 = vpop.permute.xlu0 %1559
        %1561 = vrot.lane.b32.xlu0 %v1553, 125
        %v1562 = vpop.permute.xlu0 %1561
        %vm1563 = vcmask 1022976
        %v1564 = vsel %vm1563, %v1558, %v1560
        %v1565 = vsel %vm1563, %v1560, %v1562
        %v1568 = vadd.f32 %v1272, %v1564
        %v1569 = vadd.f32 %v1273, %v1565
        %v1570 = vstv %s176
        %v1571 = vmul.f32 %v1570, %v419
        %v1572 = vmul.f32 %v1570, %v415
        %v1573 = vmul.f32 %v1570, %v420
        %v1574 = vadd.f32 %v1571, 0.0
        %v1575 = vadd.f32 %v1572, 0.0
        %v1576 = vadd.f32 %v1573, 0.0
        %v1577 = vstv %s225
        %v1578 = vmul.f32 %v1577, %v431
        %v1579 = vmul.f32 %v1577, %v427
        %v1580 = vmul.f32 %v1577, %v432
        %v1581 = vadd.f32 %v1574, %v1578
        %v1582 = vadd.f32 %v1575, %v1579
        %v1583 = vadd.f32 %v1576, %v1580
        %v1584 = vstv %s183
        %v1585 = vmul.f32 %v1584, %v419
        %v1586 = vmul.f32 %v1584, %v415
        %v1587 = vmul.f32 %v1584, %v420
        %1591 = vrot.lane.b32.xlu0 %v1585, 112
        %v1592 = vpop.permute.xlu0 %1591
        %1593 = vrot.lane.b32.xlu0 %v1586, 112
        %v1594 = vpop.permute.xlu0 %1593
        %1595 = vrot.lane.b32.xlu0 %v1587, 112
        %v1596 = vpop.permute.xlu0 %1595
        %v1597 = vsel %vm457, %v1592, %v1594
        %v1598 = vsel %vm457, %v1594, %v1596
        %v1602 = vadd.f32 %v1581, %v1597
        %v1603 = vadd.f32 %v1582, %v1598
        %v1604 = vadd.f32 %v1583, %v1596
        %v1605 = vstv %s232
        %v1606 = vmul.f32 %v1605, %v431
        %v1607 = vmul.f32 %v1605, %v427
        %v1608 = vmul.f32 %v1605, %v432
        %1612 = vrot.lane.b32.xlu0 %v1606, 112
        %v1613 = vpop.permute.xlu0 %1612
        %1614 = vrot.lane.b32.xlu0 %v1607, 112
        %v1615 = vpop.permute.xlu0 %1614
        %1616 = vrot.lane.b32.xlu0 %v1608, 112
        %v1617 = vpop.permute.xlu0 %1616
        %v1618 = vsel %vm457, %v1613, %v1615
        %v1619 = vsel %vm457, %v1615, %v1617
        %v1623 = vadd.f32 %v1602, %v1618
        %v1624 = vadd.f32 %v1603, %v1619
        %v1625 = vadd.f32 %v1604, %v1617
        %v1626 = vstv %s190
        %v1627 = vmul.f32 %v1626, %v419
        %v1628 = vmul.f32 %v1626, %v415
        %v1629 = vmul.f32 %v1626, %v420
        %1633 = vrot.lane.b32.xlu0 %v1627, 96
        %v1634 = vpop.permute.xlu0 %1633
        %1635 = vrot.lane.b32.xlu0 %v1628, 96
        %v1636 = vpop.permute.xlu0 %1635
        %1637 = vrot.lane.b32.xlu0 %v1629, 96
        %v1638 = vpop.permute.xlu0 %1637
        %v1639 = vsel %vm496, %v1634, %v1636
        %v1640 = vsel %vm496, %v1636, %v1638
        %v1644 = vadd.f32 %v1623, %v1639
        %v1645 = vadd.f32 %v1624, %v1640
        %v1646 = vadd.f32 %v1625, %v1638
        %v1647 = vstv %s239
        %v1648 = vmul.f32 %v1647, %v431
        %v1649 = vmul.f32 %v1647, %v427
        %v1650 = vmul.f32 %v1647, %v432
        %1654 = vrot.lane.b32.xlu0 %v1648, 96
        %v1655 = vpop.permute.xlu0 %1654
        %1656 = vrot.lane.b32.xlu0 %v1649, 96
        %v1657 = vpop.permute.xlu0 %1656
        %1658 = vrot.lane.b32.xlu0 %v1650, 96
        %v1659 = vpop.permute.xlu0 %1658
        %v1660 = vsel %vm496, %v1655, %v1657
        %v1661 = vsel %vm496, %v1657, %v1659
        %v1665 = vadd.f32 %v1644, %v1660
        %v1666 = vadd.f32 %v1645, %v1661
        %v1667 = vadd.f32 %v1646, %v1659
        %v1668 = vstv %s197
        %v1669 = vmul.f32 %v1668, %v419
        %v1670 = vmul.f32 %v1668, %v415
        %v1671 = vmul.f32 %v1668, %v420
        %1675 = vrot.lane.b32.xlu0 %v1669, 80
        %v1676 = vpop.permute.xlu0 %1675
        %1677 = vrot.lane.b32.xlu0 %v1670, 80
        %v1678 = vpop.permute.xlu0 %1677
        %1679 = vrot.lane.b32.xlu0 %v1671, 80
        %v1680 = vpop.permute.xlu0 %1679
        %v1681 = vsel %vm535, %v1676, %v1678
        %v1682 = vsel %vm535, %v1678, %v1680
        %v1686 = vadd.f32 %v1665, %v1681
        %v1687 = vadd.f32 %v1666, %v1682
        %v1688 = vadd.f32 %v1667, %v1680
        %v1689 = vstv %s246
        %v1690 = vmul.f32 %v1689, %v431
        %v1691 = vmul.f32 %v1689, %v427
        %v1692 = vmul.f32 %v1689, %v432
        %1696 = vrot.lane.b32.xlu0 %v1690, 80
        %v1697 = vpop.permute.xlu0 %1696
        %1698 = vrot.lane.b32.xlu0 %v1691, 80
        %v1699 = vpop.permute.xlu0 %1698
        %1700 = vrot.lane.b32.xlu0 %v1692, 80
        %v1701 = vpop.permute.xlu0 %1700
        %v1702 = vsel %vm535, %v1697, %v1699
        %v1703 = vsel %vm535, %v1699, %v1701
        %v1707 = vadd.f32 %v1686, %v1702
        %v1708 = vadd.f32 %v1687, %v1703
        %v1709 = vadd.f32 %v1688, %v1701
        %v1710 = vstv %s204
        %v1711 = vmul.f32 %v1710, %v419
        %v1712 = vmul.f32 %v1710, %v415
        %v1713 = vmul.f32 %v1710, %v420
        %1717 = vrot.lane.b32.xlu0 %v1711, 64
        %v1718 = vpop.permute.xlu0 %1717
        %1719 = vrot.lane.b32.xlu0 %v1712, 64
        %v1720 = vpop.permute.xlu0 %1719
        %1721 = vrot.lane.b32.xlu0 %v1713, 64
        %v1722 = vpop.permute.xlu0 %1721
        %v1723 = vsel %vm574, %v1718, %v1720
        %v1724 = vsel %vm574, %v1720, %v1722
        %v1728 = vadd.f32 %v1707, %v1723
        %v1729 = vadd.f32 %v1708, %v1724
        %v1730 = vadd.f32 %v1709, %v1722
        %v1731 = vstv %s253
        %v1732 = vmul.f32 %v1731, %v431
        %v1733 = vmul.f32 %v1731, %v427
        %v1734 = vmul.f32 %v1731, %v432
        %1738 = vrot.lane.b32.xlu0 %v1732, 64
        %v1739 = vpop.permute.xlu0 %1738
        %1740 = vrot.lane.b32.xlu0 %v1733, 64
        %v1741 = vpop.permute.xlu0 %1740
        %1742 = vrot.lane.b32.xlu0 %v1734, 64
        %v1743 = vpop.permute.xlu0 %1742
        %v1744 = vsel %vm574, %v1739, %v1741
        %v1745 = vsel %vm574, %v1741, %v1743
        %v1749 = vadd.f32 %v1728, %v1744
        %v1750 = vadd.f32 %v1729, %v1745
        %v1751 = vadd.f32 %v1730, %v1743
        %v1752 = vstv %s211
        %v1753 = vmul.f32 %v1752, %v419
        %v1754 = vmul.f32 %v1752, %v415
        %v1755 = vmul.f32 %v1752, %v420
        %1759 = vrot.lane.b32.xlu0 %v1753, 48
        %v1760 = vpop.permute.xlu0 %1759
        %1761 = vrot.lane.b32.xlu0 %v1754, 48
        %v1762 = vpop.permute.xlu0 %1761
        %1763 = vrot.lane.b32.xlu0 %v1755, 48
        %v1764 = vpop.permute.xlu0 %1763
        %v1765 = vsel %vm613, %v1760, %v1762
        %v1766 = vsel %vm613, %v1762, %v1764
        %v1770 = vadd.f32 %v1749, %v1765
        %v1771 = vadd.f32 %v1750, %v1766
        %v1772 = vadd.f32 %v1751, %v1764
        %v1773 = vstv %s260
        %v1774 = vmul.f32 %v1773, %v431
        %v1775 = vmul.f32 %v1773, %v427
        %v1776 = vmul.f32 %v1773, %v432
        %1780 = vrot.lane.b32.xlu0 %v1774, 48
        %v1781 = vpop.permute.xlu0 %1780
        %1782 = vrot.lane.b32.xlu0 %v1775, 48
        %v1783 = vpop.permute.xlu0 %1782
        %1784 = vrot.lane.b32.xlu0 %v1776, 48
        %v1785 = vpop.permute.xlu0 %1784
        %v1786 = vsel %vm613, %v1781, %v1783
        %v1787 = vsel %vm613, %v1783, %v1785
        %v1791 = vadd.f32 %v1770, %v1786
        %v1792 = vadd.f32 %v1771, %v1787
        %v1793 = vadd.f32 %v1772, %v1785
        %v1794 = vstv %s218
        %v1795 = vmul.f32 %v1794, %v419
        %v1796 = vmul.f32 %v1794, %v415
        %v1797 = vmul.f32 %v1794, %v420
        %1801 = vrot.lane.b32.xlu0 %v1795, 32
        %v1802 = vpop.permute.xlu0 %1801
        %1803 = vrot.lane.b32.xlu0 %v1796, 32
        %v1804 = vpop.permute.xlu0 %1803
        %1805 = vrot.lane.b32.xlu0 %v1797, 32
        %v1806 = vpop.permute.xlu0 %1805
        %v1807 = vsel %vm652, %v1802, %v1804
        %v1808 = vsel %vm652, %v1804, %v1806
        %v1812 = vadd.f32 %v1791, %v1807
        %v1813 = vadd.f32 %v1792, %v1808
        %v1814 = vadd.f32 %v1793, %v1806
        %v1815 = vstv %s267
        %v1816 = vmul.f32 %v1815, %v431
        %v1817 = vmul.f32 %v1815, %v427
        %v1818 = vmul.f32 %v1815, %v432
        %1822 = vrot.lane.b32.xlu0 %v1816, 32
        %v1823 = vpop.permute.xlu0 %1822
        %1824 = vrot.lane.b32.xlu0 %v1817, 32
        %v1825 = vpop.permute.xlu0 %1824
        %1826 = vrot.lane.b32.xlu0 %v1818, 32
        %v1827 = vpop.permute.xlu0 %1826
        %v1828 = vsel %vm652, %v1823, %v1825
        %v1829 = vsel %vm652, %v1825, %v1827
        %v1833 = vadd.f32 %v1812, %v1828
        %v1834 = vadd.f32 %v1813, %v1829
        %v1835 = vadd.f32 %v1814, %v1827
        %1838 = vrot.lane.b32.xlu0 %v346, 4
        %v1839 = vpop.permute.xlu0 %1838
        %1840 = vrot.lane.b32.xlu0 %v347, 4
        %v1841 = vpop.permute.xlu0 %1840
        %vm1842 = vcmask 31744
        %v1843 = vsel %vm1842, %v1839, %v1841
        %v1847 = vmul.f32 %v1833, %v1839
        %v1848 = vmul.f32 %v1834, %v1843
        %v1849 = vmul.f32 %v1835, %v1841
        %1853 = vrot.lane.b32.xlu0 %v1847, 124
        %v1854 = vpop.permute.xlu0 %1853
        %1855 = vrot.lane.b32.xlu0 %v1848, 124
        %v1856 = vpop.permute.xlu0 %1855
        %1857 = vrot.lane.b32.xlu0 %v1849, 124
        %v1858 = vpop.permute.xlu0 %1857
        %vm1859 = vcmask 1014784
        %v1860 = vsel %vm1859, %v1854, %v1856
        %v1861 = vsel %vm1859, %v1856, %v1858
        %v1864 = vadd.f32 %v1568, %v1860
        %v1865 = vadd.f32 %v1569, %v1861
        %v1866 = vstv %s177
        %v1867 = vmul.f32 %v1866, %v419
        %v1868 = vmul.f32 %v1866, %v415
        %v1869 = vmul.f32 %v1866, %v420
        %v1870 = vadd.f32 %v1867, 0.0
        %v1871 = vadd.f32 %v1868, 0.0
        %v1872 = vadd.f32 %v1869, 0.0
        %v1873 = vstv %s226
        %v1874 = vmul.f32 %v1873, %v431
        %v1875 = vmul.f32 %v1873, %v427
        %v1876 = vmul.f32 %v1873, %v432
        %v1877 = vadd.f32 %v1870, %v1874
        %v1878 = vadd.f32 %v1871, %v1875
        %v1879 = vadd.f32 %v1872, %v1876
        %v1880 = vstv %s184
        %v1881 = vmul.f32 %v1880, %v419
        %v1882 = vmul.f32 %v1880, %v415
        %v1883 = vmul.f32 %v1880, %v420
        %1887 = vrot.lane.b32.xlu0 %v1881, 112
        %v1888 = vpop.permute.xlu0 %1887
        %1889 = vrot.lane.b32.xlu0 %v1882, 112
        %v1890 = vpop.permute.xlu0 %1889
        %1891 = vrot.lane.b32.xlu0 %v1883, 112
        %v1892 = vpop.permute.xlu0 %1891
        %v1893 = vsel %vm457, %v1888, %v1890
        %v1894 = vsel %vm457, %v1890, %v1892
        %v1898 = vadd.f32 %v1877, %v1893
        %v1899 = vadd.f32 %v1878, %v1894
        %v1900 = vadd.f32 %v1879, %v1892
        %v1901 = vstv %s233
        %v1902 = vmul.f32 %v1901, %v431
        %v1903 = vmul.f32 %v1901, %v427
        %v1904 = vmul.f32 %v1901, %v432
        %1908 = vrot.lane.b32.xlu0 %v1902, 112
        %v1909 = vpop.permute.xlu0 %1908
        %1910 = vrot.lane.b32.xlu0 %v1903, 112
        %v1911 = vpop.permute.xlu0 %1910
        %1912 = vrot.lane.b32.xlu0 %v1904, 112
        %v1913 = vpop.permute.xlu0 %1912
        %v1914 = vsel %vm457, %v1909, %v1911
        %v1915 = vsel %vm457, %v1911, %v1913
        %v1919 = vadd.f32 %v1898, %v1914
        %v1920 = vadd.f32 %v1899, %v1915
        %v1921 = vadd.f32 %v1900, %v1913
        %v1922 = vstv %s191
        %v1923 = vmul.f32 %v1922, %v419
        %v1924 = vmul.f32 %v1922, %v415
        %v1925 = vmul.f32 %v1922, %v420
        %1929 = vrot.lane.b32.xlu0 %v1923, 96
        %v1930 = vpop.permute.xlu0 %1929
        %1931 = vrot.lane.b32.xlu0 %v1924, 96
        %v1932 = vpop.permute.xlu0 %1931
        %1933 = vrot.lane.b32.xlu0 %v1925, 96
        %v1934 = vpop.permute.xlu0 %1933
        %v1935 = vsel %vm496, %v1930, %v1932
        %v1936 = vsel %vm496, %v1932, %v1934
        %v1940 = vadd.f32 %v1919, %v1935
        %v1941 = vadd.f32 %v1920, %v1936
        %v1942 = vadd.f32 %v1921, %v1934
        %v1943 = vstv %s240
        %v1944 = vmul.f32 %v1943, %v431
        %v1945 = vmul.f32 %v1943, %v427
        %v1946 = vmul.f32 %v1943, %v432
        %1950 = vrot.lane.b32.xlu0 %v1944, 96
        %v1951 = vpop.permute.xlu0 %1950
        %1952 = vrot.lane.b32.xlu0 %v1945, 96
        %v1953 = vpop.permute.xlu0 %1952
        %1954 = vrot.lane.b32.xlu0 %v1946, 96
        %v1955 = vpop.permute.xlu0 %1954
        %v1956 = vsel %vm496, %v1951, %v1953
        %v1957 = vsel %vm496, %v1953, %v1955
        %v1961 = vadd.f32 %v1940, %v1956
        %v1962 = vadd.f32 %v1941, %v1957
        %v1963 = vadd.f32 %v1942, %v1955
        %v1964 = vstv %s198
        %v1965 = vmul.f32 %v1964, %v419
        %v1966 = vmul.f32 %v1964, %v415
        %v1967 = vmul.f32 %v1964, %v420
        %1971 = vrot.lane.b32.xlu0 %v1965, 80
        %v1972 = vpop.permute.xlu0 %1971
        %1973 = vrot.lane.b32.xlu0 %v1966, 80
        %v1974 = vpop.permute.xlu0 %1973
        %1975 = vrot.lane.b32.xlu0 %v1967, 80
        %v1976 = vpop.permute.xlu0 %1975
        %v1977 = vsel %vm535, %v1972, %v1974
        %v1978 = vsel %vm535, %v1974, %v1976
        %v1982 = vadd.f32 %v1961, %v1977
        %v1983 = vadd.f32 %v1962, %v1978
        %v1984 = vadd.f32 %v1963, %v1976
        %v1985 = vstv %s247
        %v1986 = vmul.f32 %v1985, %v431
        %v1987 = vmul.f32 %v1985, %v427
        %v1988 = vmul.f32 %v1985, %v432
        %1992 = vrot.lane.b32.xlu0 %v1986, 80
        %v1993 = vpop.permute.xlu0 %1992
        %1994 = vrot.lane.b32.xlu0 %v1987, 80
        %v1995 = vpop.permute.xlu0 %1994
        %1996 = vrot.lane.b32.xlu0 %v1988, 80
        %v1997 = vpop.permute.xlu0 %1996
        %v1998 = vsel %vm535, %v1993, %v1995
        %v1999 = vsel %vm535, %v1995, %v1997
        %v2003 = vadd.f32 %v1982, %v1998
        %v2004 = vadd.f32 %v1983, %v1999
        %v2005 = vadd.f32 %v1984, %v1997
        %v2006 = vstv %s205
        %v2007 = vmul.f32 %v2006, %v419
        %v2008 = vmul.f32 %v2006, %v415
        %v2009 = vmul.f32 %v2006, %v420
        %2013 = vrot.lane.b32.xlu0 %v2007, 64
        %v2014 = vpop.permute.xlu0 %2013
        %2015 = vrot.lane.b32.xlu0 %v2008, 64
        %v2016 = vpop.permute.xlu0 %2015
        %2017 = vrot.lane.b32.xlu0 %v2009, 64
        %v2018 = vpop.permute.xlu0 %2017
        %v2019 = vsel %vm574, %v2014, %v2016
        %v2020 = vsel %vm574, %v2016, %v2018
        %v2024 = vadd.f32 %v2003, %v2019
        %v2025 = vadd.f32 %v2004, %v2020
        %v2026 = vadd.f32 %v2005, %v2018
        %v2027 = vstv %s254
        %v2028 = vmul.f32 %v2027, %v431
        %v2029 = vmul.f32 %v2027, %v427
        %v2030 = vmul.f32 %v2027, %v432
        %2034 = vrot.lane.b32.xlu0 %v2028, 64
        %v2035 = vpop.permute.xlu0 %2034
        %2036 = vrot.lane.b32.xlu0 %v2029, 64
        %v2037 = vpop.permute.xlu0 %2036
        %2038 = vrot.lane.b32.xlu0 %v2030, 64
        %v2039 = vpop.permute.xlu0 %2038
        %v2040 = vsel %vm574, %v2035, %v2037
        %v2041 = vsel %vm574, %v2037, %v2039
        %v2045 = vadd.f32 %v2024, %v2040
        %v2046 = vadd.f32 %v2025, %v2041
        %v2047 = vadd.f32 %v2026, %v2039
        %v2048 = vstv %s212
        %v2049 = vmul.f32 %v2048, %v419
        %v2050 = vmul.f32 %v2048, %v415
        %v2051 = vmul.f32 %v2048, %v420
        %2055 = vrot.lane.b32.xlu0 %v2049, 48
        %v2056 = vpop.permute.xlu0 %2055
        %2057 = vrot.lane.b32.xlu0 %v2050, 48
        %v2058 = vpop.permute.xlu0 %2057
        %2059 = vrot.lane.b32.xlu0 %v2051, 48
        %v2060 = vpop.permute.xlu0 %2059
        %v2061 = vsel %vm613, %v2056, %v2058
        %v2062 = vsel %vm613, %v2058, %v2060
        %v2066 = vadd.f32 %v2045, %v2061
        %v2067 = vadd.f32 %v2046, %v2062
        %v2068 = vadd.f32 %v2047, %v2060
        %v2069 = vstv %s261
        %v2070 = vmul.f32 %v2069, %v431
        %v2071 = vmul.f32 %v2069, %v427
        %v2072 = vmul.f32 %v2069, %v432
        %2076 = vrot.lane.b32.xlu0 %v2070, 48
        %v2077 = vpop.permute.xlu0 %2076
        %2078 = vrot.lane.b32.xlu0 %v2071, 48
        %v2079 = vpop.permute.xlu0 %2078
        %2080 = vrot.lane.b32.xlu0 %v2072, 48
        %v2081 = vpop.permute.xlu0 %2080
        %v2082 = vsel %vm613, %v2077, %v2079
        %v2083 = vsel %vm613, %v2079, %v2081
        %v2087 = vadd.f32 %v2066, %v2082
        %v2088 = vadd.f32 %v2067, %v2083
        %v2089 = vadd.f32 %v2068, %v2081
        %v2090 = vstv %s219
        %v2091 = vmul.f32 %v2090, %v419
        %v2092 = vmul.f32 %v2090, %v415
        %v2093 = vmul.f32 %v2090, %v420
        %2097 = vrot.lane.b32.xlu0 %v2091, 32
        %v2098 = vpop.permute.xlu0 %2097
        %2099 = vrot.lane.b32.xlu0 %v2092, 32
        %v2100 = vpop.permute.xlu0 %2099
        %2101 = vrot.lane.b32.xlu0 %v2093, 32
        %v2102 = vpop.permute.xlu0 %2101
        %v2103 = vsel %vm652, %v2098, %v2100
        %v2104 = vsel %vm652, %v2100, %v2102
        %v2108 = vadd.f32 %v2087, %v2103
        %v2109 = vadd.f32 %v2088, %v2104
        %v2110 = vadd.f32 %v2089, %v2102
        %v2111 = vstv %s268
        %v2112 = vmul.f32 %v2111, %v431
        %v2113 = vmul.f32 %v2111, %v427
        %v2114 = vmul.f32 %v2111, %v432
        %2118 = vrot.lane.b32.xlu0 %v2112, 32
        %v2119 = vpop.permute.xlu0 %2118
        %2120 = vrot.lane.b32.xlu0 %v2113, 32
        %v2121 = vpop.permute.xlu0 %2120
        %2122 = vrot.lane.b32.xlu0 %v2114, 32
        %v2123 = vpop.permute.xlu0 %2122
        %v2124 = vsel %vm652, %v2119, %v2121
        %v2125 = vsel %vm652, %v2121, %v2123
        %v2129 = vadd.f32 %v2108, %v2124
        %v2130 = vadd.f32 %v2109, %v2125
        %v2131 = vadd.f32 %v2110, %v2123
        %2134 = vrot.lane.b32.xlu0 %v356, 5
        %v2135 = vpop.permute.xlu0 %2134
        %2136 = vrot.lane.b32.xlu0 %v357, 5
        %v2137 = vpop.permute.xlu0 %2136
        %vm2138 = vcmask 39936
        %v2139 = vsel %vm2138, %v2135, %v2137
        %v2143 = vmul.f32 %v2129, %v2135
        %v2144 = vmul.f32 %v2130, %v2139
        %v2145 = vmul.f32 %v2131, %v2137
        %2149 = vrot.lane.b32.xlu0 %v2143, 123
        %v2150 = vpop.permute.xlu0 %2149
        %2151 = vrot.lane.b32.xlu0 %v2144, 123
        %v2152 = vpop.permute.xlu0 %2151
        %2153 = vrot.lane.b32.xlu0 %v2145, 123
        %v2154 = vpop.permute.xlu0 %2153
        %vm2155 = vcmask 1006592
        %v2156 = vsel %vm2155, %v2150, %v2152
        %v2157 = vsel %vm2155, %v2152, %v2154
        %v2160 = vadd.f32 %v1864, %v2156
        %v2161 = vadd.f32 %v1865, %v2157
        %v2162 = vstv %s178
        %v2163 = vmul.f32 %v2162, %v419
        %v2164 = vmul.f32 %v2162, %v415
        %v2165 = vmul.f32 %v2162, %v420
        %v2166 = vadd.f32 %v2163, 0.0
        %v2167 = vadd.f32 %v2164, 0.0
        %v2168 = vadd.f32 %v2165, 0.0
        %v2169 = vstv %s227
        %v2170 = vmul.f32 %v2169, %v431
        %v2171 = vmul.f32 %v2169, %v427
        %v2172 = vmul.f32 %v2169, %v432
        %v2173 = vadd.f32 %v2166, %v2170
        %v2174 = vadd.f32 %v2167, %v2171
        %v2175 = vadd.f32 %v2168, %v2172
        %v2176 = vstv %s185
        %v2177 = vmul.f32 %v2176, %v419
        %v2178 = vmul.f32 %v2176, %v415
        %v2179 = vmul.f32 %v2176, %v420
        %2183 = vrot.lane.b32.xlu0 %v2177, 112
        %v2184 = vpop.permute.xlu0 %2183
        %2185 = vrot.lane.b32.xlu0 %v2178, 112
        %v2186 = vpop.permute.xlu0 %2185
        %2187 = vrot.lane.b32.xlu0 %v2179, 112
        %v2188 = vpop.permute.xlu0 %2187
        %v2189 = vsel %vm457, %v2184, %v2186
        %v2190 = vsel %vm457, %v2186, %v2188
        %v2194 = vadd.f32 %v2173, %v2189
        %v2195 = vadd.f32 %v2174, %v2190
        %v2196 = vadd.f32 %v2175, %v2188
        %v2197 = vstv %s234
        %v2198 = vmul.f32 %v2197, %v431
        %v2199 = vmul.f32 %v2197, %v427
        %v2200 = vmul.f32 %v2197, %v432
        %2204 = vrot.lane.b32.xlu0 %v2198, 112
        %v2205 = vpop.permute.xlu0 %2204
        %2206 = vrot.lane.b32.xlu0 %v2199, 112
        %v2207 = vpop.permute.xlu0 %2206
        %2208 = vrot.lane.b32.xlu0 %v2200, 112
        %v2209 = vpop.permute.xlu0 %2208
        %v2210 = vsel %vm457, %v2205, %v2207
        %v2211 = vsel %vm457, %v2207, %v2209
        %v2215 = vadd.f32 %v2194, %v2210
        %v2216 = vadd.f32 %v2195, %v2211
        %v2217 = vadd.f32 %v2196, %v2209
        %v2218 = vstv %s192
        %v2219 = vmul.f32 %v2218, %v419
        %v2220 = vmul.f32 %v2218, %v415
        %v2221 = vmul.f32 %v2218, %v420
        %2225 = vrot.lane.b32.xlu0 %v2219, 96
        %v2226 = vpop.permute.xlu0 %2225
        %2227 = vrot.lane.b32.xlu0 %v2220, 96
        %v2228 = vpop.permute.xlu0 %2227
        %2229 = vrot.lane.b32.xlu0 %v2221, 96
        %v2230 = vpop.permute.xlu0 %2229
        %v2231 = vsel %vm496, %v2226, %v2228
        %v2232 = vsel %vm496, %v2228, %v2230
        %v2236 = vadd.f32 %v2215, %v2231
        %v2237 = vadd.f32 %v2216, %v2232
        %v2238 = vadd.f32 %v2217, %v2230
        %v2239 = vstv %s241
        %v2240 = vmul.f32 %v2239, %v431
        %v2241 = vmul.f32 %v2239, %v427
        %v2242 = vmul.f32 %v2239, %v432
        %2246 = vrot.lane.b32.xlu0 %v2240, 96
        %v2247 = vpop.permute.xlu0 %2246
        %2248 = vrot.lane.b32.xlu0 %v2241, 96
        %v2249 = vpop.permute.xlu0 %2248
        %2250 = vrot.lane.b32.xlu0 %v2242, 96
        %v2251 = vpop.permute.xlu0 %2250
        %v2252 = vsel %vm496, %v2247, %v2249
        %v2253 = vsel %vm496, %v2249, %v2251
        %v2257 = vadd.f32 %v2236, %v2252
        %v2258 = vadd.f32 %v2237, %v2253
        %v2259 = vadd.f32 %v2238, %v2251
        %v2260 = vstv %s199
        %v2261 = vmul.f32 %v2260, %v419
        %v2262 = vmul.f32 %v2260, %v415
        %v2263 = vmul.f32 %v2260, %v420
        %2267 = vrot.lane.b32.xlu0 %v2261, 80
        %v2268 = vpop.permute.xlu0 %2267
        %2269 = vrot.lane.b32.xlu0 %v2262, 80
        %v2270 = vpop.permute.xlu0 %2269
        %2271 = vrot.lane.b32.xlu0 %v2263, 80
        %v2272 = vpop.permute.xlu0 %2271
        %v2273 = vsel %vm535, %v2268, %v2270
        %v2274 = vsel %vm535, %v2270, %v2272
        %v2278 = vadd.f32 %v2257, %v2273
        %v2279 = vadd.f32 %v2258, %v2274
        %v2280 = vadd.f32 %v2259, %v2272
        %v2281 = vstv %s248
        %v2282 = vmul.f32 %v2281, %v431
        %v2283 = vmul.f32 %v2281, %v427
        %v2284 = vmul.f32 %v2281, %v432
        %2288 = vrot.lane.b32.xlu0 %v2282, 80
        %v2289 = vpop.permute.xlu0 %2288
        %2290 = vrot.lane.b32.xlu0 %v2283, 80
        %v2291 = vpop.permute.xlu0 %2290
        %2292 = vrot.lane.b32.xlu0 %v2284, 80
        %v2293 = vpop.permute.xlu0 %2292
        %v2294 = vsel %vm535, %v2289, %v2291
        %v2295 = vsel %vm535, %v2291, %v2293
        %v2299 = vadd.f32 %v2278, %v2294
        %v2300 = vadd.f32 %v2279, %v2295
        %v2301 = vadd.f32 %v2280, %v2293
        %v2302 = vstv %s206
        %v2303 = vmul.f32 %v2302, %v419
        %v2304 = vmul.f32 %v2302, %v415
        %v2305 = vmul.f32 %v2302, %v420
        %2309 = vrot.lane.b32.xlu0 %v2303, 64
        %v2310 = vpop.permute.xlu0 %2309
        %2311 = vrot.lane.b32.xlu0 %v2304, 64
        %v2312 = vpop.permute.xlu0 %2311
        %2313 = vrot.lane.b32.xlu0 %v2305, 64
        %v2314 = vpop.permute.xlu0 %2313
        %v2315 = vsel %vm574, %v2310, %v2312
        %v2316 = vsel %vm574, %v2312, %v2314
        %v2320 = vadd.f32 %v2299, %v2315
        %v2321 = vadd.f32 %v2300, %v2316
        %v2322 = vadd.f32 %v2301, %v2314
        %v2323 = vstv %s255
        %v2324 = vmul.f32 %v2323, %v431
        %v2325 = vmul.f32 %v2323, %v427
        %v2326 = vmul.f32 %v2323, %v432
        %2330 = vrot.lane.b32.xlu0 %v2324, 64
        %v2331 = vpop.permute.xlu0 %2330
        %2332 = vrot.lane.b32.xlu0 %v2325, 64
        %v2333 = vpop.permute.xlu0 %2332
        %2334 = vrot.lane.b32.xlu0 %v2326, 64
        %v2335 = vpop.permute.xlu0 %2334
        %v2336 = vsel %vm574, %v2331, %v2333
        %v2337 = vsel %vm574, %v2333, %v2335
        %v2341 = vadd.f32 %v2320, %v2336
        %v2342 = vadd.f32 %v2321, %v2337
        %v2343 = vadd.f32 %v2322, %v2335
        %v2344 = vstv %s213
        %v2345 = vmul.f32 %v2344, %v419
        %v2346 = vmul.f32 %v2344, %v415
        %v2347 = vmul.f32 %v2344, %v420
        %2351 = vrot.lane.b32.xlu0 %v2345, 48
        %v2352 = vpop.permute.xlu0 %2351
        %2353 = vrot.lane.b32.xlu0 %v2346, 48
        %v2354 = vpop.permute.xlu0 %2353
        %2355 = vrot.lane.b32.xlu0 %v2347, 48
        %v2356 = vpop.permute.xlu0 %2355
        %v2357 = vsel %vm613, %v2352, %v2354
        %v2358 = vsel %vm613, %v2354, %v2356
        %v2362 = vadd.f32 %v2341, %v2357
        %v2363 = vadd.f32 %v2342, %v2358
        %v2364 = vadd.f32 %v2343, %v2356
        %v2365 = vstv %s262
        %v2366 = vmul.f32 %v2365, %v431
        %v2367 = vmul.f32 %v2365, %v427
        %v2368 = vmul.f32 %v2365, %v432
        %2372 = vrot.lane.b32.xlu0 %v2366, 48
        %v2373 = vpop.permute.xlu0 %2372
        %2374 = vrot.lane.b32.xlu0 %v2367, 48
        %v2375 = vpop.permute.xlu0 %2374
        %2376 = vrot.lane.b32.xlu0 %v2368, 48
        %v2377 = vpop.permute.xlu0 %2376
        %v2378 = vsel %vm613, %v2373, %v2375
        %v2379 = vsel %vm613, %v2375, %v2377
        %v2383 = vadd.f32 %v2362, %v2378
        %v2384 = vadd.f32 %v2363, %v2379
        %v2385 = vadd.f32 %v2364, %v2377
        %v2386 = vstv %s220
        %v2387 = vmul.f32 %v2386, %v419
        %v2388 = vmul.f32 %v2386, %v415
        %v2389 = vmul.f32 %v2386, %v420
        %2393 = vrot.lane.b32.xlu0 %v2387, 32
        %v2394 = vpop.permute.xlu0 %2393
        %2395 = vrot.lane.b32.xlu0 %v2388, 32
        %v2396 = vpop.permute.xlu0 %2395
        %2397 = vrot.lane.b32.xlu0 %v2389, 32
        %v2398 = vpop.permute.xlu0 %2397
        %v2399 = vsel %vm652, %v2394, %v2396
        %v2400 = vsel %vm652, %v2396, %v2398
        %v2404 = vadd.f32 %v2383, %v2399
        %v2405 = vadd.f32 %v2384, %v2400
        %v2406 = vadd.f32 %v2385, %v2398
        %v2407 = vstv %s269
        %v2408 = vmul.f32 %v2407, %v431
        %v2409 = vmul.f32 %v2407, %v427
        %v2410 = vmul.f32 %v2407, %v432
        %2414 = vrot.lane.b32.xlu0 %v2408, 32
        %v2415 = vpop.permute.xlu0 %2414
        %2416 = vrot.lane.b32.xlu0 %v2409, 32
        %v2417 = vpop.permute.xlu0 %2416
        %2418 = vrot.lane.b32.xlu0 %v2410, 32
        %v2419 = vpop.permute.xlu0 %2418
        %v2420 = vsel %vm652, %v2415, %v2417
        %v2421 = vsel %vm652, %v2417, %v2419
        %v2425 = vadd.f32 %v2404, %v2420
        %v2426 = vadd.f32 %v2405, %v2421
        %v2427 = vadd.f32 %v2406, %v2419
        %2430 = vrot.lane.b32.xlu0 %v366, 6
        %v2431 = vpop.permute.xlu0 %2430
        %2432 = vrot.lane.b32.xlu0 %v367, 6
        %v2433 = vpop.permute.xlu0 %2432
        %vm2434 = vcmask 48128
        %v2435 = vsel %vm2434, %v2431, %v2433
        %v2439 = vmul.f32 %v2425, %v2431
        %v2440 = vmul.f32 %v2426, %v2435
        %v2441 = vmul.f32 %v2427, %v2433
        %2445 = vrot.lane.b32.xlu0 %v2439, 122
        %v2446 = vpop.permute.xlu0 %2445
        %2447 = vrot.lane.b32.xlu0 %v2440, 122
        %v2448 = vpop.permute.xlu0 %2447
        %2449 = vrot.lane.b32.xlu0 %v2441, 122
        %v2450 = vpop.permute.xlu0 %2449
        %vm2451 = vcmask 998400
        %v2452 = vsel %vm2451, %v2446, %v2448
        %v2453 = vsel %vm2451, %v2448, %v2450
        %v2456 = vadd.f32 %v2160, %v2452
        %v2457 = vadd.f32 %v2161, %v2453
        %v2458 = vxor.u32 %v2456, 2147483648
        %v2459 = vxor.u32 %v2457, 2147483648
        %v2460 = vmul.f32 %v2458, 1.442695
        %v2461 = vpow.pop %v2460
        %v2462 = vmul.f32 %v2459, 1.442695
        %v2463 = vpow.pop %v2462
        %v2464 = vadd.f32 %v2461, 1.0
        %v2465 = vadd.f32 %v2463, 1.0
        %v2466 = vrcp.pop %v2464
        %v2467 = vmul.f32 1.0, %v2466
        %v2468 = vrcp.pop %v2465
        %v2469 = vmul.f32 1.0, %v2468
        %v2470 = vlaneseq
        %v2471 = vshrl.u32 %v2470, 7
        %v2472 = vsub.s32 0, %v2471
        %v2473 = vrot.slane %v2467, %v2472
        %v2474 = vlaneseq
        %v2475 = vshrl.u32 %v2474, 7
        %v2476 = vsub.s32 0, %v2475
        %v2477 = vrot.slane %v2469, %v2476
        %v2480 = vcombine.low %v2473, %v2477
        %v2482 = vmul.f32 %v371, %v2480
        %s2483 = smul.addr %s368, 4
        %s2484 = scalar_lea.vmem %s171, %s2483 [#allocation7]
        %2485 = vst [vmem:[%s2484] sm:$0xff] %v2482
        %s2486 = sand.u32 %s75, 1
        %s2487 = scalar_lea.sflag [#allocation4], %s2486
        %s2488 = sand.u32 %s75, 1
        %s2489 = smul.addr %s2488, 8
        %s2490 = scalar_lea.vmem [#allocation7], %s2489
        // Predicated region
        $region37: #{tpu_custom_call.1} parent=27 // pred_check
          %p2491 = pneg %p85
        $region38: #{tpu_custom_call.1} parent=27 // pred_check_branch
          %2493 = sbr.rel (%p2491) target = $region40
        $region39: #{tpu_custom_call.1} parent=27 // pred_region
          %s2495 = ssub.s32 128, 128
          %2496 = vsyncadd %s2487, %s2495
          %s2497 = smul.addr %s20, 2
          %s2498 = smul.addr %s2497, 64
          %s2499 = scalar_lea.hbm %s2, %s2498
          %s2501 = sshll.u32 %s2490, 4
          %s2502 = int_to_ptr.vmem [resolvable:$true] %s2501
          %2504 = dma.vmem_to_hbm [thread:$0]  %s2502, 128, %s2499, %s2487
        $region40: #{tpu_custom_call.1} parent=27 // pred_fallthru
          _
      $region28: #{tpu_custom_call.1} parent=5 // pred_fallthru
        _
      %p2505 = scmp.le.s32.totalorder 2, %s15
      // Predicated region
      $region41: #{tpu_custom_call.1} parent=5 // pred_check
        %p2506 = pneg %p2505
      $region42: #{tpu_custom_call.1} parent=5 // pred_check_branch
        %2508 = sbr.rel (%p2506) target = $region44
      $region43: #{tpu_custom_call.1} parent=5 // pred_region
        %s2509 = ssub.s32 %s15, 2
        // Predicated region
        $region45: #{tpu_custom_call.1} parent=43 // pred_check
          %p2510 = pneg %p91
        $region46: #{tpu_custom_call.1} parent=43 // pred_check_branch
          %2512 = sbr.rel (%p2510) target = $region48
        $region47: #{tpu_custom_call.1} parent=43 // pred_region
          %s2513 = sand.u32 %s76, 1
          %s2514 = scalar_lea.sflag [#allocation4], %s2513
          %s2515 = sand.u32 %s76, 1
          %s2516 = smul.addr %s2515, 8
          %s2517 = scalar_lea.vmem [#allocation7], %s2516
          %2518 = dma.done %s2514, 128
        $region48: #{tpu_custom_call.1} parent=43 // pred_fallthru
          _
      $region44: #{tpu_custom_call.1} parent=5 // pred_fallthru
        _
    $region6: #{tpu_custom_call.1} parent=1 // loop_footer
      %s19 = sadd.s32 1, %s15
    $region7: #{tpu_custom_call.1} parent=1 // loop_footer_branch
      %14 = sbr.rel target = $region3
    $region8: #{tpu_custom_call.1} parent=1 // loop_exit
      _
    %2519 = vsyncpa [#allocation3], 1
    %s2520 = scalar_lea.sflag [#allocation3], 1
    %2521 = vsyncpa %s2520, 1
    %2522 = vsyncpa [#allocation4], 1
    %s2523 = scalar_lea.sflag [#allocation4], 1
    %2524 = vsyncpa %s2523, 1
    %2525 = vsyncpa [#allocation5], 1
    %s2526 = scalar_lea.sflag [#allocation5], 1
    %2527 = vsyncpa %s2526, 1

</llo_original>
